<compile_context>
chip_gen: v6e
topology: v6e:2x2x1
jax: 0.10.0
libtpu: 0.0.40
codegen_flags: <defaults>
</compile_context>

<pallas_src>
import math

import jax
import jax.numpy as jnp
import numpy as np
from jax.experimental import pallas as pl
from jax.experimental.pallas import tpu as pltpu


def _softplus(x):
    # matches torch.nn.Softplus(beta=1, threshold=20)
    return jnp.where(x > 20.0, x, jnp.log1p(jnp.exp(jnp.minimum(x, 20.0))))


# ----------------------------- fused model kernel ----------------------------

def _fused_kernel(xr_ref, x1g_ref, wihe_ref, bgx_ref, whh_ref, bhn_ref,
                  d1w_ref, d1b_ref, cw_ref, cb_ref, d2w_ref, d2b_ref,
                  low_ref, lob_ref, dw1_ref, db1_ref, dw2_ref, db2_ref,
                  dec_ref, z_ref, oe_ref, rnn_ref):
    f32 = jnp.float32
    B, S, E = xr_ref.shape
    H = whh_ref.shape[0]
    L = z_ref.shape[2]
    V = dec_ref.shape[2]

    # ---- GRU input gates: one wide matmul over all B*S rows -----------------
    gx = (jnp.dot(xr_ref[...].reshape(B * S, E), wihe_ref[...],
                  preferred_element_type=f32)
          + x1g_ref[...].reshape(B * S, 3 * H) + bgx_ref[...])
    gx3 = gx.reshape(B, S, 3 * H)

    # ---- GRU recurrence (fully unrolled; hidden state lives in vregs) -------
    w_hh = whh_ref[...]
    b_hn = bhn_ref[...]
    h = jnp.zeros((B, H), f32)
    for t in range(S):                      # S is small & static -> unrolled
        gx_t = gx3[:, t, :]                                  # (B, 3H)
        gh = jnp.dot(h, w_hh, preferred_element_type=f32)    # packed (H,3H)
        r = jax.nn.sigmoid(gx_t[:, :H] + gh[:, :H])
        zg = jax.nn.sigmoid(gx_t[:, H:2 * H] + gh[:, H:2 * H])
        n = jnp.tanh(gx_t[:, 2 * H:] + r * (gh[:, 2 * H:] + b_hn))
        h = (1.0 - zg) * n + zg * h
        rnn_ref[:, t, :] = h                                  # VMEM scratch

    rnn2 = rnn_ref[...].reshape(B * S, H)

    # ---- Encoder: dot_cnn1 -> causal conv (im2col, K=5H) -> dot_cnn2 --------
    y1 = _softplus(jnp.dot(rnn2, d1w_ref[...], preferred_element_type=f32)
                   + d1b_ref[...])
    xp = jnp.concatenate([jnp.zeros((B, 4, H), f32), y1.reshape(B, S, H)],
                         axis=1)                              # in-kernel left pad
    cols = jnp.concatenate([xp[:, tau:tau + S, :] for tau in range(5)], axis=-1)
    cv = _softplus(jnp.dot(cols.reshape(B * S, 5 * H), cw_ref[...],
                           preferred_element_type=f32) + cb_ref[...])
    y2 = _softplus(jnp.dot(cv, d2w_ref[...], preferred_element_type=f32)
                   + d2b_ref[...])
    y = rnn2 + y2                          # residual; dropout = identity (eval)
    z2 = jnp.dot(y, low_ref[...], preferred_element_type=f32) + lob_ref[...]

    # ---- Decoder -------------------------------------------------------------
    oe2 = jnp.dot(z2, dw1_ref[...], preferred_element_type=f32) + db1_ref[...]
    dec2 = (jnp.dot(jnp.tanh(oe2), dw2_ref[...], preferred_element_type=f32)
            + db2_ref[...])

    z_ref[...] = z2.reshape(B, S, L)
    oe_ref[...] = oe2.reshape(B, S, E)
    dec_ref[...] = dec2.reshape(B, S, V)


# --------------------------------- full model --------------------------------

def model_forward(params, tokens, hp):
    B, S = tokens.shape
    V = hp["total_items"] + 1
    E = hp["item_embed_size"]
    H = hp["rnn_size"]
    L = hp["latent_size"]

    # embedding + (one_hot @ W_ih_t[E:]) as row gathers — no dense (B,S,V)
    x_real = params["embed"][tokens]                       # (B, S, E)
    x1g = params["w_ih_t"][E:][tokens]                     # (B, S, 3H)
    w_ih_e = params["w_ih_t"][:E]                          # (E, 3H)

    # fold r/z hidden biases into precomputed gates; b_hn stays in-kernel
    b_gx = params["b_ih"] + jnp.concatenate(
        [params["b_hh"][:2 * H], jnp.zeros((H,), jnp.float32)])
    b_hn = params["b_hh"][2 * H:]

    cw = params["enc_cnn_w"].reshape(5 * H, 2 * H)         # im2col conv weight

    inputs = [
        x_real, x1g, w_ih_e, b_gx.reshape(1, 3 * H),
        params["w_hh_t"], b_hn.reshape(1, H),
        params["enc_dot1_w"], params["enc_dot1_b"].reshape(1, H),
        cw, params["enc_cnn_b"].reshape(1, 2 * H),
        params["enc_dot2_w"], params["enc_dot2_b"].reshape(1, H),
        params["enc_lino_w"], params["enc_lino_b"].reshape(1, L),
        params["dec_w1"], params["dec_b1"].reshape(1, E),
        params["dec_w2"], params["dec_b2"].reshape(1, V),
    ]

    def full_spec(shape):
        n = len(shape)
        return pl.BlockSpec(shape, lambda i, _n=n: (0,) * _n)

    out_shapes = (jax.ShapeDtypeStruct((B, S, V), jnp.float32),   # dec_out
                  jax.ShapeDtypeStruct((B, S, L), jnp.float32),   # z_inferred
                  jax.ShapeDtypeStruct((B, S, E), jnp.float32))   # out_embed

    # NOTE: at these toy shapes the whole working set is << 1 MiB so whole-array
    # blocks with a single grid step are optimal; at realistic B*S / vocab
    # sizes the M and V dims should be tiled to 128-multiples with a parallel
    # grid (and VMEM budgeted for v7x's 64 MiB).
    dec_out, z_inferred, out_embed = pl.pallas_call(
        _fused_kernel,
        out_shape=out_shapes,
        grid=(1,),
        in_specs=[full_spec(a.shape) for a in inputs],
        out_specs=tuple(full_spec(s.shape) for s in out_shapes),
        scratch_shapes=[pltpu.VMEM((B, S, H), jnp.float32)],
        compiler_params=pltpu.CompilerParams(dimension_semantics=("arbitrary",)),
    )(*inputs)

    return dec_out, x_real, z_inferred, out_embed


# ------------------------- pure-JAX reference (check) ------------------------

def reference_forward(params, tokens, hp):
    B, S = tokens.shape
    V = hp["total_items"] + 1
    H = hp["rnn_size"]

    x_real = params["embed"][tokens]
    x1 = jax.nn.one_hot(tokens, V, dtype=jnp.float32)
    x_cat = jnp.concatenate([x_real, x1], axis=-1)

    def step(h, x_t):
        gx = x_t @ params["w_ih_t"] + params["b_ih"]
        gh = h @ params["w_hh_t"] + params["b_hh"]
        r = jax.nn.sigmoid(gx[:, :H] + gh[:, :H])
        z = jax.nn.sigmoid(gx[:, H:2 * H] + gh[:, H:2 * H])
        n = jnp.tanh(gx[:, 2 * H:] + r * gh[:, 2 * H:])
        h_new = (1.0 - z) * n + z * h
        return h_new, h_new

    h0 = jnp.zeros((B, H), jnp.float32)
    _, hs = jax.lax.scan(step, h0, jnp.transpose(x_cat, (1, 0, 2)))
    rnn_out = jnp.transpose(hs, (1, 0, 2))

    y = _softplus(rnn_out @ params["enc_dot1_w"] + params["enc_dot1_b"])
    ypad = jnp.pad(y, ((0, 0), (4, 0), (0, 0)))
    acc = sum(jnp.einsum("bsc,co->bso", ypad[:, tau:tau + S, :], params["enc_cnn_w"][tau])
              for tau in range(5))
    y = _softplus(acc + params["enc_cnn_b"])
    y = _softplus(y @ params["enc_dot2_w"] + params["enc_dot2_b"])
    y = rnn_out + y
    z_inferred = y @ params["enc_lino_w"] + params["enc_lino_b"]
    out_embed = z_inferred @ params["dec_w1"] + params["dec_b1"]
    dec_out = jnp.tanh(out_embed) @ params["dec_w2"] + params["dec_b2"]
    return dec_out, x_real, z_inferred, out_embed


# ----------------------------------- main ------------------------------------

def make_params(key, hp):
    V = hp["total_items"] + 1
    E = hp["item_embed_size"]
    H = hp["rnn_size"]
    L = hp["latent_size"]

    def xavier(k, fan_in, fan_out):
        std = math.sqrt(2.0 / (fan_in + fan_out))
        return std * jax.random.normal(k, (fan_in, fan_out), jnp.float32)

    ks = jax.random.split(key, 16)
    s = 1.0 / math.sqrt(H)
    params = {
        "embed": jax.random.normal(ks[0], (V, E), jnp.float32),
        # GRU weights stored transposed: (in, 3H) / (H, 3H), gate order [r|z|n]
        "w_ih_t": s * jax.random.normal(ks[1], (E + V, 3 * H), jnp.float32),
        "b_ih": s * jax.random.normal(ks[2], (3 * H,), jnp.float32),
        "w_hh_t": s * jax.random.normal(ks[3], (H, 3 * H), jnp.float32),
        "b_hh": s * jax.random.normal(ks[4], (3 * H,), jnp.float32),
        # Encoder
        "enc_dot1_w": xavier(ks[5], H, H),
        "enc_dot1_b": 0.01 * jax.random.normal(ks[6], (H,), jnp.float32),
        "enc_cnn_w": (1.0 / math.sqrt(5 * H)) *
                     jax.random.normal(ks[7], (5, H, 2 * H), jnp.float32),
        "enc_cnn_b": 0.01 * jax.random.normal(ks[8], (2 * H,), jnp.float32),
        "enc_dot2_w": xavier(ks[9], 2 * H, H),
        "enc_dot2_b": 0.01 * jax.random.normal(ks[10], (H,), jnp.float32),
        "enc_lino_w": xavier(ks[11], H, L),
        "enc_lino_b": 0.01 * jax.random.normal(ks[12], (L,), jnp.float32),
        # Decoder (xavier_normal_ per the module)
        "dec_w1": xavier(ks[13], L, E),
        "dec_b1": jnp.zeros((E,), jnp.float32),
        "dec_w2": xavier(ks[14], E, V),
        "dec_b2": jnp.zeros((V,), jnp.float32),
    }
    # TODO(synk): AddEps (torch.randn_like) branch and train-mode Dropout are
    # stochastic; run with add_eps=False and eval-mode (identity) dropout.
    return params


if __name__ == "__main__":
    hp = {
        "total_items": 20,       # vocab = 21
        "item_embed_size": 16,
        "rnn_size": 32,
        "hidden_size": 32,       # unused in forward (Model.linear_o / linear1)
        "latent_size": 8,
        "add_eps": False,
    }
    B, S = 2, 8

    key = jax.random.PRNGKey(0)
    pkey, tkey = jax.random.split(key)
    params = make_params(pkey, hp)
    tokens = jax.random.randint(tkey, (B, S), 0, hp["total_items"] + 1, dtype=jnp.int32)

    fwd = jax.jit(lambda p, t: model_forward(p, t, hp))
    outs = fwd(params, tokens)
    outs = jax.block_until_ready(outs)

    refs = reference_forward(params, tokens, hp)
    for o, r in zip(outs, refs):
        np.testing.assert_allclose(np.asarray(o), np.asarray(r), rtol=1e-2, atol=1e-2)

    print("KERNEL_OK")
</pallas_src>

<mosaic_0001>
module attributes {stable_mosaic.version = 11 : i64} {
  func.func @_fused_kernel(%arg0: i32, %arg1: memref<2x8x16xf32, #tpu.memory_space<vmem>>, %arg2: memref<2x8x96xf32, #tpu.memory_space<vmem>>, %arg3: memref<16x96xf32, #tpu.memory_space<vmem>>, %arg4: memref<1x96xf32, #tpu.memory_space<vmem>>, %arg5: memref<32x96xf32, #tpu.memory_space<vmem>>, %arg6: memref<1x32xf32, #tpu.memory_space<vmem>>, %arg7: memref<32x32xf32, #tpu.memory_space<vmem>>, %arg8: memref<1x32xf32, #tpu.memory_space<vmem>>, %arg9: memref<160x64xf32, #tpu.memory_space<vmem>>, %arg10: memref<1x64xf32, #tpu.memory_space<vmem>>, %arg11: memref<64x32xf32, #tpu.memory_space<vmem>>, %arg12: memref<1x32xf32, #tpu.memory_space<vmem>>, %arg13: memref<32x8xf32, #tpu.memory_space<vmem>>, %arg14: memref<1x8xf32, #tpu.memory_space<vmem>>, %arg15: memref<8x16xf32, #tpu.memory_space<vmem>>, %arg16: memref<1x16xf32, #tpu.memory_space<vmem>>, %arg17: memref<16x21xf32, #tpu.memory_space<vmem>>, %arg18: memref<1x21xf32, #tpu.memory_space<vmem>>, %arg19: memref<2x8x21xf32, #tpu.memory_space<vmem>>, %arg20: memref<2x8x8xf32, #tpu.memory_space<vmem>>, %arg21: memref<2x8x16xf32, #tpu.memory_space<vmem>>, %arg22: memref<2x8x32xf32, #tpu.memory_space<vmem>>) attributes {dimension_semantics = [#tpu.dimension_semantics<arbitrary>], iteration_bounds = array<i64: 1>, scalar_prefetch = 0 : i64, scratch_operands = 1 : i64, tpu.core_type = #tpu.core_type<tc>, window_params = [{pipeline_mode = #tpu.pipeline_mode<synchronous>, transform_indices = @transform_0, window_bounds = array<i64: 2, 8, 16>}, {pipeline_mode = #tpu.pipeline_mode<synchronous>, transform_indices = @transform_1, window_bounds = array<i64: 2, 8, 96>}, {pipeline_mode = #tpu.pipeline_mode<synchronous>, transform_indices = @transform_2, window_bounds = array<i64: 16, 96>}, {pipeline_mode = #tpu.pipeline_mode<synchronous>, transform_indices = @transform_3, window_bounds = array<i64: 1, 96>}, {pipeline_mode = #tpu.pipeline_mode<synchronous>, transform_indices = @transform_4, window_bounds = array<i64: 32, 96>}, {pipeline_mode = #tpu.pipeline_mode<synchronous>, transform_indices = @transform_5, window_bounds = array<i64: 1, 32>}, {pipeline_mode = #tpu.pipeline_mode<synchronous>, transform_indices = @transform_6, window_bounds = array<i64: 32, 32>}, {pipeline_mode = #tpu.pipeline_mode<synchronous>, transform_indices = @transform_7, window_bounds = array<i64: 1, 32>}, {pipeline_mode = #tpu.pipeline_mode<synchronous>, transform_indices = @transform_8, window_bounds = array<i64: 160, 64>}, {pipeline_mode = #tpu.pipeline_mode<synchronous>, transform_indices = @transform_9, window_bounds = array<i64: 1, 64>}, {pipeline_mode = #tpu.pipeline_mode<synchronous>, transform_indices = @transform_10, window_bounds = array<i64: 64, 32>}, {pipeline_mode = #tpu.pipeline_mode<synchronous>, transform_indices = @transform_11, window_bounds = array<i64: 1, 32>}, {pipeline_mode = #tpu.pipeline_mode<synchronous>, transform_indices = @transform_12, window_bounds = array<i64: 32, 8>}, {pipeline_mode = #tpu.pipeline_mode<synchronous>, transform_indices = @transform_13, window_bounds = array<i64: 1, 8>}, {pipeline_mode = #tpu.pipeline_mode<synchronous>, transform_indices = @transform_14, window_bounds = array<i64: 8, 16>}, {pipeline_mode = #tpu.pipeline_mode<synchronous>, transform_indices = @transform_15, window_bounds = array<i64: 1, 16>}, {pipeline_mode = #tpu.pipeline_mode<synchronous>, transform_indices = @transform_16, window_bounds = array<i64: 16, 21>}, {pipeline_mode = #tpu.pipeline_mode<synchronous>, transform_indices = @transform_17, window_bounds = array<i64: 1, 21>}, {pipeline_mode = #tpu.pipeline_mode<synchronous>, transform_indices = @transform_18, window_bounds = array<i64: 2, 8, 21>}, {pipeline_mode = #tpu.pipeline_mode<synchronous>, transform_indices = @transform_19, window_bounds = array<i64: 2, 8, 8>}, {pipeline_mode = #tpu.pipeline_mode<synchronous>, transform_indices = @transform_20, window_bounds = array<i64: 2, 8, 16>}]} {
    %c0 = arith.constant 0 : index
    %c0_0 = arith.constant 0 : index
    %c0_1 = arith.constant 0 : index
    %0 = vector.load %arg1[%c0, %c0_0, %c0_1] : memref<2x8x16xf32, #tpu.memory_space<vmem>>, vector<2x8x16xf32>
    %1 = vector.shape_cast %0 : vector<2x8x16xf32> to vector<16x16xf32>
    %c0_2 = arith.constant 0 : index
    %c0_3 = arith.constant 0 : index
    %2 = vector.load %arg3[%c0_2, %c0_3] : memref<16x96xf32, #tpu.memory_space<vmem>>, vector<16x96xf32>
    %cst = arith.constant dense<0.000000e+00> : vector<16x96xf32>
    %3 = tpu.matmul %1, %2, %cst {dimension_numbers = #tpu.dot_dimension_numbers<[1], [0], [0], [1], [0, 0, 1, 1], [], []>} : vector<16x16xf32>, vector<16x96xf32>, vector<16x96xf32> -> vector<16x96xf32>
    %c0_4 = arith.constant 0 : index
    %c0_5 = arith.constant 0 : index
    %c0_6 = arith.constant 0 : index
    %4 = vector.load %arg2[%c0_4, %c0_5, %c0_6] : memref<2x8x96xf32, #tpu.memory_space<vmem>>, vector<2x8x96xf32>
    %5 = vector.shape_cast %4 : vector<2x8x96xf32> to vector<16x96xf32>
    %6 = arith.addf %3, %5 : vector<16x96xf32>
    %c0_7 = arith.constant 0 : index
    %c0_8 = arith.constant 0 : index
    %7 = vector.load %arg4[%c0_7, %c0_8] : memref<1x96xf32, #tpu.memory_space<vmem>>, vector<1x96xf32>
    %8 = vector.broadcast %7 : vector<1x96xf32> to vector<16x96xf32>
    %9 = arith.addf %6, %8 : vector<16x96xf32>
    %10 = vector.shape_cast %9 : vector<16x96xf32> to vector<2x8x96xf32>
    %c0_9 = arith.constant 0 : index
    %c0_10 = arith.constant 0 : index
    %11 = vector.load %arg5[%c0_9, %c0_10] : memref<32x96xf32, #tpu.memory_space<vmem>>, vector<32x96xf32>
    %c0_11 = arith.constant 0 : index
    %c0_12 = arith.constant 0 : index
    %12 = vector.load %arg6[%c0_11, %c0_12] : memref<1x32xf32, #tpu.memory_space<vmem>>, vector<1x32xf32>
    %cst_13 = arith.constant 0.000000e+00 : f32
    %13 = vector.broadcast %cst_13 : f32 to vector<2x32xf32>
    %14 = vector.extract_strided_slice %10 {offsets = [0, 0, 0], sizes = [2, 1, 96], strides = [1, 1, 1]} : vector<2x8x96xf32> to vector<2x1x96xf32>
    %15 = vector.shape_cast %14 : vector<2x1x96xf32> to vector<2x96xf32>
    %cst_14 = arith.constant dense<0.000000e+00> : vector<2x96xf32>
    %16 = tpu.matmul %13, %11, %cst_14 {dimension_numbers = #tpu.dot_dimension_numbers<[1], [0], [0], [1], [0, 0, 1, 1], [], []>} : vector<2x32xf32>, vector<32x96xf32>, vector<2x96xf32> -> vector<2x96xf32>
    %17 = vector.extract_strided_slice %15 {offsets = [0, 0], sizes = [2, 32], strides = [1, 1]} : vector<2x96xf32> to vector<2x32xf32>
    %18 = vector.extract_strided_slice %16 {offsets = [0, 0], sizes = [2, 32], strides = [1, 1]} : vector<2x96xf32> to vector<2x32xf32>
    %19 = arith.addf %17, %18 : vector<2x32xf32>
    %20 = arith.negf %19 : vector<2x32xf32>
    %21 = math.exp %20 : vector<2x32xf32>
    %cst_15 = arith.constant 1.000000e+00 : f32
    %22 = vector.broadcast %cst_15 : f32 to vector<2x32xf32>
    %23 = arith.addf %22, %21 : vector<2x32xf32>
    %24 = arith.divf %22, %23 : vector<2x32xf32>
    %25 = vector.extract_strided_slice %15 {offsets = [0, 32], sizes = [2, 32], strides = [1, 1]} : vector<2x96xf32> to vector<2x32xf32>
    %26 = vector.extract_strided_slice %16 {offsets = [0, 32], sizes = [2, 32], strides = [1, 1]} : vector<2x96xf32> to vector<2x32xf32>
    %27 = arith.addf %25, %26 : vector<2x32xf32>
    %28 = arith.negf %27 : vector<2x32xf32>
    %29 = math.exp %28 : vector<2x32xf32>
    %cst_16 = arith.constant 1.000000e+00 : f32
    %30 = vector.broadcast %cst_16 : f32 to vector<2x32xf32>
    %31 = arith.addf %30, %29 : vector<2x32xf32>
    %32 = arith.divf %30, %31 : vector<2x32xf32>
    %33 = vector.extract_strided_slice %15 {offsets = [0, 64], sizes = [2, 32], strides = [1, 1]} : vector<2x96xf32> to vector<2x32xf32>
    %34 = vector.extract_strided_slice %16 {offsets = [0, 64], sizes = [2, 32], strides = [1, 1]} : vector<2x96xf32> to vector<2x32xf32>
    %35 = vector.broadcast %12 : vector<1x32xf32> to vector<2x32xf32>
    %36 = arith.addf %34, %35 : vector<2x32xf32>
    %37 = arith.mulf %24, %36 : vector<2x32xf32>
    %38 = arith.addf %33, %37 : vector<2x32xf32>
    %39 = math.tanh %38 : vector<2x32xf32>
    %cst_17 = arith.constant 1.000000e+00 : f32
    %40 = vector.broadcast %cst_17 : f32 to vector<2x32xf32>
    %41 = arith.subf %40, %32 : vector<2x32xf32>
    %42 = arith.mulf %41, %39 : vector<2x32xf32>
    %43 = arith.mulf %32, %13 : vector<2x32xf32>
    %44 = arith.addf %42, %43 : vector<2x32xf32>
    %c0_18 = arith.constant 0 : index
    %c0_19 = arith.constant 0 : index
    %c0_20 = arith.constant 0 : index
    %45 = vector.load %arg22[%c0_18, %c0_19, %c0_20] : memref<2x8x32xf32, #tpu.memory_space<vmem>>, vector<2x1x32xf32>
    %46 = vector.shape_cast %45 : vector<2x1x32xf32> to vector<2x32xf32>
    %47 = vector.shape_cast %44 : vector<2x32xf32> to vector<2x1x32xf32>
    tpu.vector_store %arg22[%c0_18, %c0_19, %c0_20], %47 {strides = array<i32>} : memref<2x8x32xf32, #tpu.memory_space<vmem>>, vector<2x1x32xf32>,
    %48 = vector.extract_strided_slice %10 {offsets = [0, 1, 0], sizes = [2, 1, 96], strides = [1, 1, 1]} : vector<2x8x96xf32> to vector<2x1x96xf32>
    %49 = vector.shape_cast %48 : vector<2x1x96xf32> to vector<2x96xf32>
    %cst_21 = arith.constant dense<0.000000e+00> : vector<2x96xf32>
    %50 = tpu.matmul %44, %11, %cst_21 {dimension_numbers = #tpu.dot_dimension_numbers<[1], [0], [0], [1], [0, 0, 1, 1], [], []>} : vector<2x32xf32>, vector<32x96xf32>, vector<2x96xf32> -> vector<2x96xf32>
    %51 = vector.extract_strided_slice %49 {offsets = [0, 0], sizes = [2, 32], strides = [1, 1]} : vector<2x96xf32> to vector<2x32xf32>
    %52 = vector.extract_strided_slice %50 {offsets = [0, 0], sizes = [2, 32], strides = [1, 1]} : vector<2x96xf32> to vector<2x32xf32>
    %53 = arith.addf %51, %52 : vector<2x32xf32>
    %54 = arith.negf %53 : vector<2x32xf32>
    %55 = math.exp %54 : vector<2x32xf32>
    %cst_22 = arith.constant 1.000000e+00 : f32
    %56 = vector.broadcast %cst_22 : f32 to vector<2x32xf32>
    %57 = arith.addf %56, %55 : vector<2x32xf32>
    %58 = arith.divf %56, %57 : vector<2x32xf32>
    %59 = vector.extract_strided_slice %49 {offsets = [0, 32], sizes = [2, 32], strides = [1, 1]} : vector<2x96xf32> to vector<2x32xf32>
    %60 = vector.extract_strided_slice %50 {offsets = [0, 32], sizes = [2, 32], strides = [1, 1]} : vector<2x96xf32> to vector<2x32xf32>
    %61 = arith.addf %59, %60 : vector<2x32xf32>
    %62 = arith.negf %61 : vector<2x32xf32>
    %63 = math.exp %62 : vector<2x32xf32>
    %cst_23 = arith.constant 1.000000e+00 : f32
    %64 = vector.broadcast %cst_23 : f32 to vector<2x32xf32>
    %65 = arith.addf %64, %63 : vector<2x32xf32>
    %66 = arith.divf %64, %65 : vector<2x32xf32>
    %67 = vector.extract_strided_slice %49 {offsets = [0, 64], sizes = [2, 32], strides = [1, 1]} : vector<2x96xf32> to vector<2x32xf32>
    %68 = vector.extract_strided_slice %50 {offsets = [0, 64], sizes = [2, 32], strides = [1, 1]} : vector<2x96xf32> to vector<2x32xf32>
    %69 = vector.broadcast %12 : vector<1x32xf32> to vector<2x32xf32>
    %70 = arith.addf %68, %69 : vector<2x32xf32>
    %71 = arith.mulf %58, %70 : vector<2x32xf32>
    %72 = arith.addf %67, %71 : vector<2x32xf32>
    %73 = math.tanh %72 : vector<2x32xf32>
    %cst_24 = arith.constant 1.000000e+00 : f32
    %74 = vector.broadcast %cst_24 : f32 to vector<2x32xf32>
    %75 = arith.subf %74, %66 : vector<2x32xf32>
    %76 = arith.mulf %75, %73 : vector<2x32xf32>
    %77 = arith.mulf %66, %44 : vector<2x32xf32>
    %78 = arith.addf %76, %77 : vector<2x32xf32>
    %c0_25 = arith.constant 0 : index
    %c1 = arith.constant 1 : index
    %c0_26 = arith.constant 0 : index
    %79 = vector.load %arg22[%c0_25, %c1, %c0_26] : memref<2x8x32xf32, #tpu.memory_space<vmem>>, vector<2x1x32xf32>
    %80 = vector.shape_cast %79 : vector<2x1x32xf32> to vector<2x32xf32>
    %81 = vector.shape_cast %78 : vector<2x32xf32> to vector<2x1x32xf32>
    tpu.vector_store %arg22[%c0_25, %c1, %c0_26], %81 {strides = array<i32>} : memref<2x8x32xf32, #tpu.memory_space<vmem>>, vector<2x1x32xf32>,
    %82 = vector.extract_strided_slice %10 {offsets = [0, 2, 0], sizes = [2, 1, 96], strides = [1, 1, 1]} : vector<2x8x96xf32> to vector<2x1x96xf32>
    %83 = vector.shape_cast %82 : vector<2x1x96xf32> to vector<2x96xf32>
    %cst_27 = arith.constant dense<0.000000e+00> : vector<2x96xf32>
    %84 = tpu.matmul %78, %11, %cst_27 {dimension_numbers = #tpu.dot_dimension_numbers<[1], [0], [0], [1], [0, 0, 1, 1], [], []>} : vector<2x32xf32>, vector<32x96xf32>, vector<2x96xf32> -> vector<2x96xf32>
    %85 = vector.extract_strided_slice %83 {offsets = [0, 0], sizes = [2, 32], strides = [1, 1]} : vector<2x96xf32> to vector<2x32xf32>
    %86 = vector.extract_strided_slice %84 {offsets = [0, 0], sizes = [2, 32], strides = [1, 1]} : vector<2x96xf32> to vector<2x32xf32>
    %87 = arith.addf %85, %86 : vector<2x32xf32>
    %88 = arith.negf %87 : vector<2x32xf32>
    %89 = math.exp %88 : vector<2x32xf32>
    %cst_28 = arith.constant 1.000000e+00 : f32
    %90 = vector.broadcast %cst_28 : f32 to vector<2x32xf32>
    %91 = arith.addf %90, %89 : vector<2x32xf32>
    %92 = arith.divf %90, %91 : vector<2x32xf32>
    %93 = vector.extract_strided_slice %83 {offsets = [0, 32], sizes = [2, 32], strides = [1, 1]} : vector<2x96xf32> to vector<2x32xf32>
    %94 = vector.extract_strided_slice %84 {offsets = [0, 32], sizes = [2, 32], strides = [1, 1]} : vector<2x96xf32> to vector<2x32xf32>
    %95 = arith.addf %93, %94 : vector<2x32xf32>
    %96 = arith.negf %95 : vector<2x32xf32>
    %97 = math.exp %96 : vector<2x32xf32>
    %cst_29 = arith.constant 1.000000e+00 : f32
    %98 = vector.broadcast %cst_29 : f32 to vector<2x32xf32>
    %99 = arith.addf %98, %97 : vector<2x32xf32>
    %100 = arith.divf %98, %99 : vector<2x32xf32>
    %101 = vector.extract_strided_slice %83 {offsets = [0, 64], sizes = [2, 32], strides = [1, 1]} : vector<2x96xf32> to vector<2x32xf32>
    %102 = vector.extract_strided_slice %84 {offsets = [0, 64], sizes = [2, 32], strides = [1, 1]} : vector<2x96xf32> to vector<2x32xf32>
    %103 = vector.broadcast %12 : vector<1x32xf32> to vector<2x32xf32>
    %104 = arith.addf %102, %103 : vector<2x32xf32>
    %105 = arith.mulf %92, %104 : vector<2x32xf32>
    %106 = arith.addf %101, %105 : vector<2x32xf32>
    %107 = math.tanh %106 : vector<2x32xf32>
    %cst_30 = arith.constant 1.000000e+00 : f32
    %108 = vector.broadcast %cst_30 : f32 to vector<2x32xf32>
    %109 = arith.subf %108, %100 : vector<2x32xf32>
    %110 = arith.mulf %109, %107 : vector<2x32xf32>
    %111 = arith.mulf %100, %78 : vector<2x32xf32>
    %112 = arith.addf %110, %111 : vector<2x32xf32>
    %c0_31 = arith.constant 0 : index
    %c2 = arith.constant 2 : index
    %c0_32 = arith.constant 0 : index
    %113 = vector.load %arg22[%c0_31, %c2, %c0_32] : memref<2x8x32xf32, #tpu.memory_space<vmem>>, vector<2x1x32xf32>
    %114 = vector.shape_cast %113 : vector<2x1x32xf32> to vector<2x32xf32>
    %115 = vector.shape_cast %112 : vector<2x32xf32> to vector<2x1x32xf32>
    tpu.vector_store %arg22[%c0_31, %c2, %c0_32], %115 {strides = array<i32>} : memref<2x8x32xf32, #tpu.memory_space<vmem>>, vector<2x1x32xf32>,
    %116 = vector.extract_strided_slice %10 {offsets = [0, 3, 0], sizes = [2, 1, 96], strides = [1, 1, 1]} : vector<2x8x96xf32> to vector<2x1x96xf32>
    %117 = vector.shape_cast %116 : vector<2x1x96xf32> to vector<2x96xf32>
    %cst_33 = arith.constant dense<0.000000e+00> : vector<2x96xf32>
    %118 = tpu.matmul %112, %11, %cst_33 {dimension_numbers = #tpu.dot_dimension_numbers<[1], [0], [0], [1], [0, 0, 1, 1], [], []>} : vector<2x32xf32>, vector<32x96xf32>, vector<2x96xf32> -> vector<2x96xf32>
    %119 = vector.extract_strided_slice %117 {offsets = [0, 0], sizes = [2, 32], strides = [1, 1]} : vector<2x96xf32> to vector<2x32xf32>
    %120 = vector.extract_strided_slice %118 {offsets = [0, 0], sizes = [2, 32], strides = [1, 1]} : vector<2x96xf32> to vector<2x32xf32>
    %121 = arith.addf %119, %120 : vector<2x32xf32>
    %122 = arith.negf %121 : vector<2x32xf32>
    %123 = math.exp %122 : vector<2x32xf32>
    %cst_34 = arith.constant 1.000000e+00 : f32
    %124 = vector.broadcast %cst_34 : f32 to vector<2x32xf32>
    %125 = arith.addf %124, %123 : vector<2x32xf32>
    %126 = arith.divf %124, %125 : vector<2x32xf32>
    %127 = vector.extract_strided_slice %117 {offsets = [0, 32], sizes = [2, 32], strides = [1, 1]} : vector<2x96xf32> to vector<2x32xf32>
    %128 = vector.extract_strided_slice %118 {offsets = [0, 32], sizes = [2, 32], strides = [1, 1]} : vector<2x96xf32> to vector<2x32xf32>
    %129 = arith.addf %127, %128 : vector<2x32xf32>
    %130 = arith.negf %129 : vector<2x32xf32>
    %131 = math.exp %130 : vector<2x32xf32>
    %cst_35 = arith.constant 1.000000e+00 : f32
    %132 = vector.broadcast %cst_35 : f32 to vector<2x32xf32>
    %133 = arith.addf %132, %131 : vector<2x32xf32>
    %134 = arith.divf %132, %133 : vector<2x32xf32>
    %135 = vector.extract_strided_slice %117 {offsets = [0, 64], sizes = [2, 32], strides = [1, 1]} : vector<2x96xf32> to vector<2x32xf32>
    %136 = vector.extract_strided_slice %118 {offsets = [0, 64], sizes = [2, 32], strides = [1, 1]} : vector<2x96xf32> to vector<2x32xf32>
    %137 = vector.broadcast %12 : vector<1x32xf32> to vector<2x32xf32>
    %138 = arith.addf %136, %137 : vector<2x32xf32>
    %139 = arith.mulf %126, %138 : vector<2x32xf32>
    %140 = arith.addf %135, %139 : vector<2x32xf32>
    %141 = math.tanh %140 : vector<2x32xf32>
    %cst_36 = arith.constant 1.000000e+00 : f32
    %142 = vector.broadcast %cst_36 : f32 to vector<2x32xf32>
    %143 = arith.subf %142, %134 : vector<2x32xf32>
    %144 = arith.mulf %143, %141 : vector<2x32xf32>
    %145 = arith.mulf %134, %112 : vector<2x32xf32>
    %146 = arith.addf %144, %145 : vector<2x32xf32>
    %c0_37 = arith.constant 0 : index
    %c3 = arith.constant 3 : index
    %c0_38 = arith.constant 0 : index
    %147 = vector.load %arg22[%c0_37, %c3, %c0_38] : memref<2x8x32xf32, #tpu.memory_space<vmem>>, vector<2x1x32xf32>
    %148 = vector.shape_cast %147 : vector<2x1x32xf32> to vector<2x32xf32>
    %149 = vector.shape_cast %146 : vector<2x32xf32> to vector<2x1x32xf32>
    tpu.vector_store %arg22[%c0_37, %c3, %c0_38], %149 {strides = array<i32>} : memref<2x8x32xf32, #tpu.memory_space<vmem>>, vector<2x1x32xf32>,
    %150 = vector.extract_strided_slice %10 {offsets = [0, 4, 0], sizes = [2, 1, 96], strides = [1, 1, 1]} : vector<2x8x96xf32> to vector<2x1x96xf32>
    %151 = vector.shape_cast %150 : vector<2x1x96xf32> to vector<2x96xf32>
    %cst_39 = arith.constant dense<0.000000e+00> : vector<2x96xf32>
    %152 = tpu.matmul %146, %11, %cst_39 {dimension_numbers = #tpu.dot_dimension_numbers<[1], [0], [0], [1], [0, 0, 1, 1], [], []>} : vector<2x32xf32>, vector<32x96xf32>, vector<2x96xf32> -> vector<2x96xf32>
    %153 = vector.extract_strided_slice %151 {offsets = [0, 0], sizes = [2, 32], strides = [1, 1]} : vector<2x96xf32> to vector<2x32xf32>
    %154 = vector.extract_strided_slice %152 {offsets = [0, 0], sizes = [2, 32], strides = [1, 1]} : vector<2x96xf32> to vector<2x32xf32>
    %155 = arith.addf %153, %154 : vector<2x32xf32>
    %156 = arith.negf %155 : vector<2x32xf32>
    %157 = math.exp %156 : vector<2x32xf32>
    %cst_40 = arith.constant 1.000000e+00 : f32
    %158 = vector.broadcast %cst_40 : f32 to vector<2x32xf32>
    %159 = arith.addf %158, %157 : vector<2x32xf32>
    %160 = arith.divf %158, %159 : vector<2x32xf32>
    %161 = vector.extract_strided_slice %151 {offsets = [0, 32], sizes = [2, 32], strides = [1, 1]} : vector<2x96xf32> to vector<2x32xf32>
    %162 = vector.extract_strided_slice %152 {offsets = [0, 32], sizes = [2, 32], strides = [1, 1]} : vector<2x96xf32> to vector<2x32xf32>
    %163 = arith.addf %161, %162 : vector<2x32xf32>
    %164 = arith.negf %163 : vector<2x32xf32>
    %165 = math.exp %164 : vector<2x32xf32>
    %cst_41 = arith.constant 1.000000e+00 : f32
    %166 = vector.broadcast %cst_41 : f32 to vector<2x32xf32>
    %167 = arith.addf %166, %165 : vector<2x32xf32>
    %168 = arith.divf %166, %167 : vector<2x32xf32>
    %169 = vector.extract_strided_slice %151 {offsets = [0, 64], sizes = [2, 32], strides = [1, 1]} : vector<2x96xf32> to vector<2x32xf32>
    %170 = vector.extract_strided_slice %152 {offsets = [0, 64], sizes = [2, 32], strides = [1, 1]} : vector<2x96xf32> to vector<2x32xf32>
    %171 = vector.broadcast %12 : vector<1x32xf32> to vector<2x32xf32>
    %172 = arith.addf %170, %171 : vector<2x32xf32>
    %173 = arith.mulf %160, %172 : vector<2x32xf32>
    %174 = arith.addf %169, %173 : vector<2x32xf32>
    %175 = math.tanh %174 : vector<2x32xf32>
    %cst_42 = arith.constant 1.000000e+00 : f32
    %176 = vector.broadcast %cst_42 : f32 to vector<2x32xf32>
    %177 = arith.subf %176, %168 : vector<2x32xf32>
    %178 = arith.mulf %177, %175 : vector<2x32xf32>
    %179 = arith.mulf %168, %146 : vector<2x32xf32>
    %180 = arith.addf %178, %179 : vector<2x32xf32>
    %c0_43 = arith.constant 0 : index
    %c4 = arith.constant 4 : index
    %c0_44 = arith.constant 0 : index
    %181 = vector.load %arg22[%c0_43, %c4, %c0_44] : memref<2x8x32xf32, #tpu.memory_space<vmem>>, vector<2x1x32xf32>
    %182 = vector.shape_cast %181 : vector<2x1x32xf32> to vector<2x32xf32>
    %183 = vector.shape_cast %180 : vector<2x32xf32> to vector<2x1x32xf32>
    tpu.vector_store %arg22[%c0_43, %c4, %c0_44], %183 {strides = array<i32>} : memref<2x8x32xf32, #tpu.memory_space<vmem>>, vector<2x1x32xf32>,
    %184 = vector.extract_strided_slice %10 {offsets = [0, 5, 0], sizes = [2, 1, 96], strides = [1, 1, 1]} : vector<2x8x96xf32> to vector<2x1x96xf32>
    %185 = vector.shape_cast %184 : vector<2x1x96xf32> to vector<2x96xf32>
    %cst_45 = arith.constant dense<0.000000e+00> : vector<2x96xf32>
    %186 = tpu.matmul %180, %11, %cst_45 {dimension_numbers = #tpu.dot_dimension_numbers<[1], [0], [0], [1], [0, 0, 1, 1], [], []>} : vector<2x32xf32>, vector<32x96xf32>, vector<2x96xf32> -> vector<2x96xf32>
    %187 = vector.extract_strided_slice %185 {offsets = [0, 0], sizes = [2, 32], strides = [1, 1]} : vector<2x96xf32> to vector<2x32xf32>
    %188 = vector.extract_strided_slice %186 {offsets = [0, 0], sizes = [2, 32], strides = [1, 1]} : vector<2x96xf32> to vector<2x32xf32>
    %189 = arith.addf %187, %188 : vector<2x32xf32>
    %190 = arith.negf %189 : vector<2x32xf32>
    %191 = math.exp %190 : vector<2x32xf32>
    %cst_46 = arith.constant 1.000000e+00 : f32
    %192 = vector.broadcast %cst_46 : f32 to vector<2x32xf32>
    %193 = arith.addf %192, %191 : vector<2x32xf32>
    %194 = arith.divf %192, %193 : vector<2x32xf32>
    %195 = vector.extract_strided_slice %185 {offsets = [0, 32], sizes = [2, 32], strides = [1, 1]} : vector<2x96xf32> to vector<2x32xf32>
    %196 = vector.extract_strided_slice %186 {offsets = [0, 32], sizes = [2, 32], strides = [1, 1]} : vector<2x96xf32> to vector<2x32xf32>
    %197 = arith.addf %195, %196 : vector<2x32xf32>
    %198 = arith.negf %197 : vector<2x32xf32>
    %199 = math.exp %198 : vector<2x32xf32>
    %cst_47 = arith.constant 1.000000e+00 : f32
    %200 = vector.broadcast %cst_47 : f32 to vector<2x32xf32>
    %201 = arith.addf %200, %199 : vector<2x32xf32>
    %202 = arith.divf %200, %201 : vector<2x32xf32>
    %203 = vector.extract_strided_slice %185 {offsets = [0, 64], sizes = [2, 32], strides = [1, 1]} : vector<2x96xf32> to vector<2x32xf32>
    %204 = vector.extract_strided_slice %186 {offsets = [0, 64], sizes = [2, 32], strides = [1, 1]} : vector<2x96xf32> to vector<2x32xf32>
    %205 = vector.broadcast %12 : vector<1x32xf32> to vector<2x32xf32>
    %206 = arith.addf %204, %205 : vector<2x32xf32>
    %207 = arith.mulf %194, %206 : vector<2x32xf32>
    %208 = arith.addf %203, %207 : vector<2x32xf32>
    %209 = math.tanh %208 : vector<2x32xf32>
    %cst_48 = arith.constant 1.000000e+00 : f32
    %210 = vector.broadcast %cst_48 : f32 to vector<2x32xf32>
    %211 = arith.subf %210, %202 : vector<2x32xf32>
    %212 = arith.mulf %211, %209 : vector<2x32xf32>
    %213 = arith.mulf %202, %180 : vector<2x32xf32>
    %214 = arith.addf %212, %213 : vector<2x32xf32>
    %c0_49 = arith.constant 0 : index
    %c5 = arith.constant 5 : index
    %c0_50 = arith.constant 0 : index
    %215 = vector.load %arg22[%c0_49, %c5, %c0_50] : memref<2x8x32xf32, #tpu.memory_space<vmem>>, vector<2x1x32xf32>
    %216 = vector.shape_cast %215 : vector<2x1x32xf32> to vector<2x32xf32>
    %217 = vector.shape_cast %214 : vector<2x32xf32> to vector<2x1x32xf32>
    tpu.vector_store %arg22[%c0_49, %c5, %c0_50], %217 {strides = array<i32>} : memref<2x8x32xf32, #tpu.memory_space<vmem>>, vector<2x1x32xf32>,
    %218 = vector.extract_strided_slice %10 {offsets = [0, 6, 0], sizes = [2, 1, 96], strides = [1, 1, 1]} : vector<2x8x96xf32> to vector<2x1x96xf32>
    %219 = vector.shape_cast %218 : vector<2x1x96xf32> to vector<2x96xf32>
    %cst_51 = arith.constant dense<0.000000e+00> : vector<2x96xf32>
    %220 = tpu.matmul %214, %11, %cst_51 {dimension_numbers = #tpu.dot_dimension_numbers<[1], [0], [0], [1], [0, 0, 1, 1], [], []>} : vector<2x32xf32>, vector<32x96xf32>, vector<2x96xf32> -> vector<2x96xf32>
    %221 = vector.extract_strided_slice %219 {offsets = [0, 0], sizes = [2, 32], strides = [1, 1]} : vector<2x96xf32> to vector<2x32xf32>
    %222 = vector.extract_strided_slice %220 {offsets = [0, 0], sizes = [2, 32], strides = [1, 1]} : vector<2x96xf32> to vector<2x32xf32>
    %223 = arith.addf %221, %222 : vector<2x32xf32>
    %224 = arith.negf %223 : vector<2x32xf32>
    %225 = math.exp %224 : vector<2x32xf32>
    %cst_52 = arith.constant 1.000000e+00 : f32
    %226 = vector.broadcast %cst_52 : f32 to vector<2x32xf32>
    %227 = arith.addf %226, %225 : vector<2x32xf32>
    %228 = arith.divf %226, %227 : vector<2x32xf32>
    %229 = vector.extract_strided_slice %219 {offsets = [0, 32], sizes = [2, 32], strides = [1, 1]} : vector<2x96xf32> to vector<2x32xf32>
    %230 = vector.extract_strided_slice %220 {offsets = [0, 32], sizes = [2, 32], strides = [1, 1]} : vector<2x96xf32> to vector<2x32xf32>
    %231 = arith.addf %229, %230 : vector<2x32xf32>
    %232 = arith.negf %231 : vector<2x32xf32>
    %233 = math.exp %232 : vector<2x32xf32>
    %cst_53 = arith.constant 1.000000e+00 : f32
    %234 = vector.broadcast %cst_53 : f32 to vector<2x32xf32>
    %235 = arith.addf %234, %233 : vector<2x32xf32>
    %236 = arith.divf %234, %235 : vector<2x32xf32>
    %237 = vector.extract_strided_slice %219 {offsets = [0, 64], sizes = [2, 32], strides = [1, 1]} : vector<2x96xf32> to vector<2x32xf32>
    %238 = vector.extract_strided_slice %220 {offsets = [0, 64], sizes = [2, 32], strides = [1, 1]} : vector<2x96xf32> to vector<2x32xf32>
    %239 = vector.broadcast %12 : vector<1x32xf32> to vector<2x32xf32>
    %240 = arith.addf %238, %239 : vector<2x32xf32>
    %241 = arith.mulf %228, %240 : vector<2x32xf32>
    %242 = arith.addf %237, %241 : vector<2x32xf32>
    %243 = math.tanh %242 : vector<2x32xf32>
    %cst_54 = arith.constant 1.000000e+00 : f32
    %244 = vector.broadcast %cst_54 : f32 to vector<2x32xf32>
    %245 = arith.subf %244, %236 : vector<2x32xf32>
    %246 = arith.mulf %245, %243 : vector<2x32xf32>
    %247 = arith.mulf %236, %214 : vector<2x32xf32>
    %248 = arith.addf %246, %247 : vector<2x32xf32>
    %c0_55 = arith.constant 0 : index
    %c6 = arith.constant 6 : index
    %c0_56 = arith.constant 0 : index
    %249 = vector.load %arg22[%c0_55, %c6, %c0_56] : memref<2x8x32xf32, #tpu.memory_space<vmem>>, vector<2x1x32xf32>
    %250 = vector.shape_cast %249 : vector<2x1x32xf32> to vector<2x32xf32>
    %251 = vector.shape_cast %248 : vector<2x32xf32> to vector<2x1x32xf32>
    tpu.vector_store %arg22[%c0_55, %c6, %c0_56], %251 {strides = array<i32>} : memref<2x8x32xf32, #tpu.memory_space<vmem>>, vector<2x1x32xf32>,
    %252 = vector.extract_strided_slice %10 {offsets = [0, 7, 0], sizes = [2, 1, 96], strides = [1, 1, 1]} : vector<2x8x96xf32> to vector<2x1x96xf32>
    %253 = vector.shape_cast %252 : vector<2x1x96xf32> to vector<2x96xf32>
    %cst_57 = arith.constant dense<0.000000e+00> : vector<2x96xf32>
    %254 = tpu.matmul %248, %11, %cst_57 {dimension_numbers = #tpu.dot_dimension_numbers<[1], [0], [0], [1], [0, 0, 1, 1], [], []>} : vector<2x32xf32>, vector<32x96xf32>, vector<2x96xf32> -> vector<2x96xf32>
    %255 = vector.extract_strided_slice %253 {offsets = [0, 0], sizes = [2, 32], strides = [1, 1]} : vector<2x96xf32> to vector<2x32xf32>
    %256 = vector.extract_strided_slice %254 {offsets = [0, 0], sizes = [2, 32], strides = [1, 1]} : vector<2x96xf32> to vector<2x32xf32>
    %257 = arith.addf %255, %256 : vector<2x32xf32>
    %258 = arith.negf %257 : vector<2x32xf32>
    %259 = math.exp %258 : vector<2x32xf32>
    %cst_58 = arith.constant 1.000000e+00 : f32
    %260 = vector.broadcast %cst_58 : f32 to vector<2x32xf32>
    %261 = arith.addf %260, %259 : vector<2x32xf32>
    %262 = arith.divf %260, %261 : vector<2x32xf32>
    %263 = vector.extract_strided_slice %253 {offsets = [0, 32], sizes = [2, 32], strides = [1, 1]} : vector<2x96xf32> to vector<2x32xf32>
    %264 = vector.extract_strided_slice %254 {offsets = [0, 32], sizes = [2, 32], strides = [1, 1]} : vector<2x96xf32> to vector<2x32xf32>
    %265 = arith.addf %263, %264 : vector<2x32xf32>
    %266 = arith.negf %265 : vector<2x32xf32>
    %267 = math.exp %266 : vector<2x32xf32>
    %cst_59 = arith.constant 1.000000e+00 : f32
    %268 = vector.broadcast %cst_59 : f32 to vector<2x32xf32>
    %269 = arith.addf %268, %267 : vector<2x32xf32>
    %270 = arith.divf %268, %269 : vector<2x32xf32>
    %271 = vector.extract_strided_slice %253 {offsets = [0, 64], sizes = [2, 32], strides = [1, 1]} : vector<2x96xf32> to vector<2x32xf32>
    %272 = vector.extract_strided_slice %254 {offsets = [0, 64], sizes = [2, 32], strides = [1, 1]} : vector<2x96xf32> to vector<2x32xf32>
    %273 = vector.broadcast %12 : vector<1x32xf32> to vector<2x32xf32>
    %274 = arith.addf %272, %273 : vector<2x32xf32>
    %275 = arith.mulf %262, %274 : vector<2x32xf32>
    %276 = arith.addf %271, %275 : vector<2x32xf32>
    %277 = math.tanh %276 : vector<2x32xf32>
    %cst_60 = arith.constant 1.000000e+00 : f32
    %278 = vector.broadcast %cst_60 : f32 to vector<2x32xf32>
    %279 = arith.subf %278, %270 : vector<2x32xf32>
    %280 = arith.mulf %279, %277 : vector<2x32xf32>
    %281 = arith.mulf %270, %248 : vector<2x32xf32>
    %282 = arith.addf %280, %281 : vector<2x32xf32>
    %c0_61 = arith.constant 0 : index
    %c7 = arith.constant 7 : index
    %c0_62 = arith.constant 0 : index
    %283 = vector.load %arg22[%c0_61, %c7, %c0_62] : memref<2x8x32xf32, #tpu.memory_space<vmem>>, vector<2x1x32xf32>
    %284 = vector.shape_cast %283 : vector<2x1x32xf32> to vector<2x32xf32>
    %285 = vector.shape_cast %282 : vector<2x32xf32> to vector<2x1x32xf32>
    tpu.vector_store %arg22[%c0_61, %c7, %c0_62], %285 {strides = array<i32>} : memref<2x8x32xf32, #tpu.memory_space<vmem>>, vector<2x1x32xf32>,
    %c0_63 = arith.constant 0 : index
    %c0_64 = arith.constant 0 : index
    %c0_65 = arith.constant 0 : index
    %286 = vector.load %arg22[%c0_63, %c0_64, %c0_65] : memref<2x8x32xf32, #tpu.memory_space<vmem>>, vector<2x8x32xf32>
    %287 = vector.shape_cast %286 : vector<2x8x32xf32> to vector<16x32xf32>
    %c0_66 = arith.constant 0 : index
    %c0_67 = arith.constant 0 : index
    %288 = vector.load %arg7[%c0_66, %c0_67] : memref<32x32xf32, #tpu.memory_space<vmem>>, vector<32x32xf32>
    %cst_68 = arith.constant dense<0.000000e+00> : vector<16x32xf32>
    %289 = tpu.matmul %287, %288, %cst_68 {dimension_numbers = #tpu.dot_dimension_numbers<[1], [0], [0], [1], [0, 0, 1, 1], [], []>} : vector<16x32xf32>, vector<32x32xf32>, vector<16x32xf32> -> vector<16x32xf32>
    %c0_69 = arith.constant 0 : index
    %c0_70 = arith.constant 0 : index
    %290 = vector.load %arg8[%c0_69, %c0_70] : memref<1x32xf32, #tpu.memory_space<vmem>>, vector<1x32xf32>
    %291 = vector.broadcast %290 : vector<1x32xf32> to vector<16x32xf32>
    %292 = arith.addf %289, %291 : vector<16x32xf32>
    %cst_71 = arith.constant 2.000000e+01 : f32
    %293 = vector.broadcast %cst_71 : f32 to vector<16x32xf32>
    %294 = arith.cmpf ogt, %292, %293 : vector<16x32xf32>
    %cst_72 = arith.constant 2.000000e+01 : f32
    %295 = vector.broadcast %cst_72 : f32 to vector<16x32xf32>
    %296 = arith.minimumf %292, %295 : vector<16x32xf32>
    %297 = math.exp %296 : vector<16x32xf32>
    %298 = math.log1p %297 : vector<16x32xf32>
    %299 = arith.select %294, %292, %298 : vector<16x32xi1>, vector<16x32xf32>
    %cst_73 = arith.constant 0.000000e+00 : f32
    %300 = vector.broadcast %cst_73 : f32 to vector<2x4x32xf32>
    %301 = vector.shape_cast %299 : vector<16x32xf32> to vector<2x8x32xf32>
    %302 = tpu.concatenate %300, %301 in 1 : vector<2x4x32xf32>, vector<2x8x32xf32> -> vector<2x12x32xf32>
    %303 = vector.extract_strided_slice %302 {offsets = [0, 0, 0], sizes = [2, 8, 32], strides = [1, 1, 1]} : vector<2x12x32xf32> to vector<2x8x32xf32>
    %304 = vector.extract_strided_slice %302 {offsets = [0, 1, 0], sizes = [2, 8, 32], strides = [1, 1, 1]} : vector<2x12x32xf32> to vector<2x8x32xf32>
    %305 = vector.extract_strided_slice %302 {offsets = [0, 2, 0], sizes = [2, 8, 32], strides = [1, 1, 1]} : vector<2x12x32xf32> to vector<2x8x32xf32>
    %306 = vector.extract_strided_slice %302 {offsets = [0, 3, 0], sizes = [2, 8, 32], strides = [1, 1, 1]} : vector<2x12x32xf32> to vector<2x8x32xf32>
    %307 = vector.extract_strided_slice %302 {offsets = [0, 4, 0], sizes = [2, 8, 32], strides = [1, 1, 1]} : vector<2x12x32xf32> to vector<2x8x32xf32>
    %308 = tpu.concatenate %303, %304, %305, %306, %307 in 2 : vector<2x8x32xf32>, vector<2x8x32xf32>, vector<2x8x32xf32>, vector<2x8x32xf32>, vector<2x8x32xf32> -> vector<2x8x160xf32>
    %309 = vector.shape_cast %308 : vector<2x8x160xf32> to vector<16x160xf32>
    %c0_74 = arith.constant 0 : index
    %c0_75 = arith.constant 0 : index
    %310 = vector.load %arg9[%c0_74, %c0_75] : memref<160x64xf32, #tpu.memory_space<vmem>>, vector<160x64xf32>
    %cst_76 = arith.constant dense<0.000000e+00> : vector<16x64xf32>
    %311 = tpu.matmul %309, %310, %cst_76 {dimension_numbers = #tpu.dot_dimension_numbers<[1], [0], [0], [1], [0, 0, 1, 1], [], []>} : vector<16x160xf32>, vector<160x64xf32>, vector<16x64xf32> -> vector<16x64xf32>
    %c0_77 = arith.constant 0 : index
    %c0_78 = arith.constant 0 : index
    %312 = vector.load %arg10[%c0_77, %c0_78] : memref<1x64xf32, #tpu.memory_space<vmem>>, vector<1x64xf32>
    %313 = vector.broadcast %312 : vector<1x64xf32> to vector<16x64xf32>
    %314 = arith.addf %311, %313 : vector<16x64xf32>
    %cst_79 = arith.constant 2.000000e+01 : f32
    %315 = vector.broadcast %cst_79 : f32 to vector<16x64xf32>
    %316 = arith.cmpf ogt, %314, %315 : vector<16x64xf32>
    %cst_80 = arith.constant 2.000000e+01 : f32
    %317 = vector.broadcast %cst_80 : f32 to vector<16x64xf32>
    %318 = arith.minimumf %314, %317 : vector<16x64xf32>
    %319 = math.exp %318 : vector<16x64xf32>
    %320 = math.log1p %319 : vector<16x64xf32>
    %321 = arith.select %316, %314, %320 : vector<16x64xi1>, vector<16x64xf32>
    %c0_81 = arith.constant 0 : index
    %c0_82 = arith.constant 0 : index
    %322 = vector.load %arg11[%c0_81, %c0_82] : memref<64x32xf32, #tpu.memory_space<vmem>>, vector<64x32xf32>
    %cst_83 = arith.constant dense<0.000000e+00> : vector<16x32xf32>
    %323 = tpu.matmul %321, %322, %cst_83 {dimension_numbers = #tpu.dot_dimension_numbers<[1], [0], [0], [1], [0, 0, 1, 1], [], []>} : vector<16x64xf32>, vector<64x32xf32>, vector<16x32xf32> -> vector<16x32xf32>
    %c0_84 = arith.constant 0 : index
    %c0_85 = arith.constant 0 : index
    %324 = vector.load %arg12[%c0_84, %c0_85] : memref<1x32xf32, #tpu.memory_space<vmem>>, vector<1x32xf32>
    %325 = vector.broadcast %324 : vector<1x32xf32> to vector<16x32xf32>
    %326 = arith.addf %323, %325 : vector<16x32xf32>
    %cst_86 = arith.constant 2.000000e+01 : f32
    %327 = vector.broadcast %cst_86 : f32 to vector<16x32xf32>
    %328 = arith.cmpf ogt, %326, %327 : vector<16x32xf32>
    %cst_87 = arith.constant 2.000000e+01 : f32
    %329 = vector.broadcast %cst_87 : f32 to vector<16x32xf32>
    %330 = arith.minimumf %326, %329 : vector<16x32xf32>
    %331 = math.exp %330 : vector<16x32xf32>
    %332 = math.log1p %331 : vector<16x32xf32>
    %333 = arith.select %328, %326, %332 : vector<16x32xi1>, vector<16x32xf32>
    %334 = arith.addf %287, %333 : vector<16x32xf32>
    %c0_88 = arith.constant 0 : index
    %c0_89 = arith.constant 0 : index
    %335 = vector.load %arg13[%c0_88, %c0_89] : memref<32x8xf32, #tpu.memory_space<vmem>>, vector<32x8xf32>
    %cst_90 = arith.constant dense<0.000000e+00> : vector<16x8xf32>
    %336 = tpu.matmul %334, %335, %cst_90 {dimension_numbers = #tpu.dot_dimension_numbers<[1], [0], [0], [1], [0, 0, 1, 1], [], []>} : vector<16x32xf32>, vector<32x8xf32>, vector<16x8xf32> -> vector<16x8xf32>
    %c0_91 = arith.constant 0 : index
    %c0_92 = arith.constant 0 : index
    %337 = vector.load %arg14[%c0_91, %c0_92] : memref<1x8xf32, #tpu.memory_space<vmem>>, vector<1x8xf32>
    %338 = vector.broadcast %337 : vector<1x8xf32> to vector<16x8xf32>
    %339 = arith.addf %336, %338 : vector<16x8xf32>
    %c0_93 = arith.constant 0 : index
    %c0_94 = arith.constant 0 : index
    %340 = vector.load %arg15[%c0_93, %c0_94] : memref<8x16xf32, #tpu.memory_space<vmem>>, vector<8x16xf32>
    %cst_95 = arith.constant dense<0.000000e+00> : vector<16x16xf32>
    %341 = tpu.matmul %339, %340, %cst_95 {dimension_numbers = #tpu.dot_dimension_numbers<[1], [0], [0], [1], [0, 0, 1, 1], [], []>} : vector<16x8xf32>, vector<8x16xf32>, vector<16x16xf32> -> vector<16x16xf32>
    %c0_96 = arith.constant 0 : index
    %c0_97 = arith.constant 0 : index
    %342 = vector.load %arg16[%c0_96, %c0_97] : memref<1x16xf32, #tpu.memory_space<vmem>>, vector<1x16xf32>
    %343 = vector.broadcast %342 : vector<1x16xf32> to vector<16x16xf32>
    %344 = arith.addf %341, %343 : vector<16x16xf32>
    %345 = math.tanh %344 : vector<16x16xf32>
    %c0_98 = arith.constant 0 : index
    %c0_99 = arith.constant 0 : index
    %346 = vector.load %arg17[%c0_98, %c0_99] : memref<16x21xf32, #tpu.memory_space<vmem>>, vector<16x21xf32>
    %cst_100 = arith.constant dense<0.000000e+00> : vector<16x21xf32>
    %347 = tpu.matmul %345, %346, %cst_100 {dimension_numbers = #tpu.dot_dimension_numbers<[1], [0], [0], [1], [0, 0, 1, 1], [], []>} : vector<16x16xf32>, vector<16x21xf32>, vector<16x21xf32> -> vector<16x21xf32>
    %c0_101 = arith.constant 0 : index
    %c0_102 = arith.constant 0 : index
    %348 = vector.load %arg18[%c0_101, %c0_102] : memref<1x21xf32, #tpu.memory_space<vmem>>, vector<1x21xf32>
    %349 = vector.broadcast %348 : vector<1x21xf32> to vector<16x21xf32>
    %350 = arith.addf %347, %349 : vector<16x21xf32>
    %351 = vector.shape_cast %339 : vector<16x8xf32> to vector<2x8x8xf32>
    %c0_103 = arith.constant 0 : index
    %c0_104 = arith.constant 0 : index
    %c0_105 = arith.constant 0 : index
    %352 = vector.load %arg20[%c0_103, %c0_104, %c0_105] : memref<2x8x8xf32, #tpu.memory_space<vmem>>, vector<2x8x8xf32>
    tpu.vector_store %arg20[%c0_103, %c0_104, %c0_105], %351 {strides = array<i32>} : memref<2x8x8xf32, #tpu.memory_space<vmem>>, vector<2x8x8xf32>,
    %353 = vector.shape_cast %344 : vector<16x16xf32> to vector<2x8x16xf32>
    %c0_106 = arith.constant 0 : index
    %c0_107 = arith.constant 0 : index
    %c0_108 = arith.constant 0 : index
    %354 = vector.load %arg21[%c0_106, %c0_107, %c0_108] : memref<2x8x16xf32, #tpu.memory_space<vmem>>, vector<2x8x16xf32>
    tpu.vector_store %arg21[%c0_106, %c0_107, %c0_108], %353 {strides = array<i32>} : memref<2x8x16xf32, #tpu.memory_space<vmem>>, vector<2x8x16xf32>,
    %355 = vector.shape_cast %350 : vector<16x21xf32> to vector<2x8x21xf32>
    %c0_109 = arith.constant 0 : index
    %c0_110 = arith.constant 0 : index
    %c0_111 = arith.constant 0 : index
    %356 = vector.load %arg19[%c0_109, %c0_110, %c0_111] : memref<2x8x21xf32, #tpu.memory_space<vmem>>, vector<2x8x21xf32>
    tpu.vector_store %arg19[%c0_109, %c0_110, %c0_111], %355 {strides = array<i32>} : memref<2x8x21xf32, #tpu.memory_space<vmem>>, vector<2x8x21xf32>,
    return
  }
  func.func @transform_0(%arg0: i32) -> (i32, i32, i32) {
    %c0_i32 = arith.constant 0 : i32
    %c0_i32_0 = arith.constant 0 : i32
    %c0_i32_1 = arith.constant 0 : i32
    %c0_i32_2 = arith.constant 0 : i32
    return %c0_i32, %c0_i32_0, %c0_i32_1 : i32, i32, i32
  }
  func.func @transform_1(%arg0: i32) -> (i32, i32, i32) {
    %c0_i32 = arith.constant 0 : i32
    %c0_i32_0 = arith.constant 0 : i32
    %c0_i32_1 = arith.constant 0 : i32
    %c0_i32_2 = arith.constant 0 : i32
    return %c0_i32, %c0_i32_0, %c0_i32_1 : i32, i32, i32
  }
  func.func @transform_2(%arg0: i32) -> (i32, i32) {
    %c0_i32 = arith.constant 0 : i32
    %c0_i32_0 = arith.constant 0 : i32
    %c0_i32_1 = arith.constant 0 : i32
    return %c0_i32, %c0_i32_0 : i32, i32
  }
  func.func @transform_3(%arg0: i32) -> (i32, i32) {
    %c0_i32 = arith.constant 0 : i32
    %c0_i32_0 = arith.constant 0 : i32
    %c0_i32_1 = arith.constant 0 : i32
    return %c0_i32, %c0_i32_0 : i32, i32
  }
  func.func @transform_4(%arg0: i32) -> (i32, i32) {
    %c0_i32 = arith.constant 0 : i32
    %c0_i32_0 = arith.constant 0 : i32
    %c0_i32_1 = arith.constant 0 : i32
    return %c0_i32, %c0_i32_0 : i32, i32
  }
  func.func @transform_5(%arg0: i32) -> (i32, i32) {
    %c0_i32 = arith.constant 0 : i32
    %c0_i32_0 = arith.constant 0 : i32
    %c0_i32_1 = arith.constant 0 : i32
    return %c0_i32, %c0_i32_0 : i32, i32
  }
  func.func @transform_6(%arg0: i32) -> (i32, i32) {
    %c0_i32 = arith.constant 0 : i32
    %c0_i32_0 = arith.constant 0 : i32
    %c0_i32_1 = arith.constant 0 : i32
    return %c0_i32, %c0_i32_0 : i32, i32
  }
  func.func @transform_7(%arg0: i32) -> (i32, i32) {
    %c0_i32 = arith.constant 0 : i32
    %c0_i32_0 = arith.constant 0 : i32
    %c0_i32_1 = arith.constant 0 : i32
    return %c0_i32, %c0_i32_0 : i32, i32
  }
  func.func @transform_8(%arg0: i32) -> (i32, i32) {
    %c0_i32 = arith.constant 0 : i32
    %c0_i32_0 = arith.constant 0 : i32
    %c0_i32_1 = arith.constant 0 : i32
    return %c0_i32, %c0_i32_0 : i32, i32
  }
  func.func @transform_9(%arg0: i32) -> (i32, i32) {
    %c0_i32 = arith.constant 0 : i32
    %c0_i32_0 = arith.constant 0 : i32
    %c0_i32_1 = arith.constant 0 : i32
    return %c0_i32, %c0_i32_0 : i32, i32
  }
  func.func @transform_10(%arg0: i32) -> (i32, i32) {
    %c0_i32 = arith.constant 0 : i32
    %c0_i32_0 = arith.constant 0 : i32
    %c0_i32_1 = arith.constant 0 : i32
    return %c0_i32, %c0_i32_0 : i32, i32
  }
  func.func @transform_11(%arg0: i32) -> (i32, i32) {
    %c0_i32 = arith.constant 0 : i32
    %c0_i32_0 = arith.constant 0 : i32
    %c0_i32_1 = arith.constant 0 : i32
    return %c0_i32, %c0_i32_0 : i32, i32
  }
  func.func @transform_12(%arg0: i32) -> (i32, i32) {
    %c0_i32 = arith.constant 0 : i32
    %c0_i32_0 = arith.constant 0 : i32
    %c0_i32_1 = arith.constant 0 : i32
    return %c0_i32, %c0_i32_0 : i32, i32
  }
  func.func @transform_13(%arg0: i32) -> (i32, i32) {
    %c0_i32 = arith.constant 0 : i32
    %c0_i32_0 = arith.constant 0 : i32
    %c0_i32_1 = arith.constant 0 : i32
    return %c0_i32, %c0_i32_0 : i32, i32
  }
  func.func @transform_14(%arg0: i32) -> (i32, i32) {
    %c0_i32 = arith.constant 0 : i32
    %c0_i32_0 = arith.constant 0 : i32
    %c0_i32_1 = arith.constant 0 : i32
    return %c0_i32, %c0_i32_0 : i32, i32
  }
  func.func @transform_15(%arg0: i32) -> (i32, i32) {
    %c0_i32 = arith.constant 0 : i32
    %c0_i32_0 = arith.constant 0 : i32
    %c0_i32_1 = arith.constant 0 : i32
    return %c0_i32, %c0_i32_0 : i32, i32
  }
  func.func @transform_16(%arg0: i32) -> (i32, i32) {
    %c0_i32 = arith.constant 0 : i32
    %c0_i32_0 = arith.constant 0 : i32
    %c0_i32_1 = arith.constant 0 : i32
    return %c0_i32, %c0_i32_0 : i32, i32
  }
  func.func @transform_17(%arg0: i32) -> (i32, i32) {
    %c0_i32 = arith.constant 0 : i32
    %c0_i32_0 = arith.constant 0 : i32
    %c0_i32_1 = arith.constant 0 : i32
    return %c0_i32, %c0_i32_0 : i32, i32
  }
  func.func @transform_18(%arg0: i32) -> (i32, i32, i32) {
    %c0_i32 = arith.constant 0 : i32
    %c0_i32_0 = arith.constant 0 : i32
    %c0_i32_1 = arith.constant 0 : i32
    %c0_i32_2 = arith.constant 0 : i32
    return %c0_i32, %c0_i32_0, %c0_i32_1 : i32, i32, i32
  }
  func.func @transform_19(%arg0: i32) -> (i32, i32, i32) {
    %c0_i32 = arith.constant 0 : i32
    %c0_i32_0 = arith.constant 0 : i32
    %c0_i32_1 = arith.constant 0 : i32
    %c0_i32_2 = arith.constant 0 : i32
    return %c0_i32, %c0_i32_0, %c0_i32_1 : i32, i32, i32
  }
  func.func @transform_20(%arg0: i32) -> (i32, i32, i32) {
    %c0_i32 = arith.constant 0 : i32
    %c0_i32_0 = arith.constant 0 : i32
    %c0_i32_1 = arith.constant 0 : i32
    %c0_i32_2 = arith.constant 0 : i32
    return %c0_i32, %c0_i32_0, %c0_i32_1 : i32, i32, i32
  }
}

</mosaic_0001>

<llo_original>
// kernel: _lambda_.1
$region0: #{_lambda_.1}
  #allocation0 [shape = 'u32[]', space=smem, size = 0x4, offset = 0x4, fixed_abs, tag = 'smem constant byte address 0x4 - core index']
  #allocation1 [shape = 'u32[144,128]{1,0:T(1,128)}', space=vmem, size = 0x12000, scoped, tag = 'internal scratch']
  #allocation2 [shape = 'f32[2,8,32]{2,1,0:T(8,128)}', space=vmem, size = 0x2000, scoped, tag = 'scratch operand']
  %s0 = inlined_call_operand.vmem [shape: f32[2,8,16], index: 0, kind: input, shape index: {}]
  %s1 = inlined_call_operand.vmem [shape: f32[2,8,96], index: 1, kind: input, shape index: {}]
  %s2 = inlined_call_operand.vmem [shape: f32[16,96], index: 2, kind: input, shape index: {}]
  %s3 = inlined_call_operand.vmem [shape: f32[1,96], index: 3, kind: input, shape index: {}]
  %s4 = inlined_call_operand.vmem [shape: f32[32,96], index: 4, kind: input, shape index: {}]
  %s5 = inlined_call_operand.vmem [shape: f32[1,32], index: 5, kind: input, shape index: {}]
  %s6 = inlined_call_operand.vmem [shape: f32[32,32], index: 6, kind: input, shape index: {}]
  %s7 = inlined_call_operand.vmem [shape: f32[1,32], index: 7, kind: input, shape index: {}]
  %s8 = inlined_call_operand.vmem [shape: f32[160,64], index: 8, kind: input, shape index: {}]
  %s9 = inlined_call_operand.vmem [shape: f32[1,64], index: 9, kind: input, shape index: {}]
  %s10 = inlined_call_operand.vmem [shape: f32[64,32], index: 10, kind: input, shape index: {}]
  %s11 = inlined_call_operand.vmem [shape: f32[1,32], index: 11, kind: input, shape index: {}]
  %s12 = inlined_call_operand.vmem [shape: f32[32,8], index: 12, kind: input, shape index: {}]
  %s13 = inlined_call_operand.vmem [shape: f32[1,8], index: 13, kind: input, shape index: {}]
  %s14 = inlined_call_operand.vmem [shape: f32[8,16], index: 14, kind: input, shape index: {}]
  %s15 = inlined_call_operand.vmem [shape: f32[1,16], index: 15, kind: input, shape index: {}]
  %s16 = inlined_call_operand.vmem [shape: f32[16,21], index: 16, kind: input, shape index: {}]
  %s17 = inlined_call_operand.vmem [shape: f32[1,21], index: 17, kind: input, shape index: {}]
  %s18 = inlined_call_operand.hbm [shape: f32[2,8,21], index: 18, kind: output, shape index: {0}]
  %s19 = inlined_call_operand.hbm [shape: f32[2,8,8], index: 19, kind: output, shape index: {1}]
  %s20 = inlined_call_operand.hbm [shape: f32[2,8,16], index: 20, kind: output, shape index: {2}]
  %21 = xla_tuple %s18, %s19, %s20
  %s22 = sld [smem:[#allocation0]]
  $region98: #{_lambda_.1} parent=0
    _
  %s24 = ssub.s32 1, %s22
  %s25 = scalar_select 0, %s24, %s22
  $region1: #{_lambda_.1} parent=0
    #allocation3 [shape = 'u8[8192]{0}', space=vmem, size = 0x2000, scoped, tag = 'output window, operand 0, single buffered']
    #allocation4 [shape = 's32[1]{0}', space=sflag, size = 0x4, scoped, tag = 'scoped memory for _lambda_.1']
    #allocation5 [shape = 'u8[8192]{0}', space=vmem, size = 0x2000, scoped, tag = 'output window, operand 1, single buffered']
    #allocation6 [shape = 's32[1]{0}', space=sflag, size = 0x4, scoped, tag = 'scoped memory for _lambda_.1']
    #allocation7 [shape = 'u8[8192]{0}', space=vmem, size = 0x2000, scoped, tag = 'output window, operand 2, single buffered']
    %26 = vsyncpa [#allocation4], 0
    %27 = vsyncpa [#allocation6], 0
    // Predicated region
    $region2: #{_lambda_.1} parent=1 // pred_check
      _
    $region3: #{_lambda_.1} parent=1 // pred_check_branch
      %29 = sbr.rel (0) target = $region5
    $region4: #{_lambda_.1} parent=1 // pred_region
      _
    $region5: #{_lambda_.1} parent=1 // pred_fallthru
      _
    // Predicated region
    $region6: #{_lambda_.1} parent=1 // pred_check
      _
    $region7: #{_lambda_.1} parent=1 // pred_check_branch
      %31 = sbr.rel (0) target = $region9
    $region8: #{_lambda_.1} parent=1 // pred_region
      _
    $region9: #{_lambda_.1} parent=1 // pred_fallthru
      _
    // Predicated region
    $region10: #{_lambda_.1} parent=1 // pred_check
      _
    $region11: #{_lambda_.1} parent=1 // pred_check_branch
      %33 = sbr.rel (0) target = $region13
    $region12: #{_lambda_.1} parent=1 // pred_region
      _
    $region13: #{_lambda_.1} parent=1 // pred_fallthru
      _
    // Predicated region
    $region14: #{_lambda_.1} parent=1 // pred_check
      _
    $region15: #{_lambda_.1} parent=1 // pred_check_branch
      %35 = sbr.rel (0) target = $region17
    $region16: #{_lambda_.1} parent=1 // pred_region
      _
    $region17: #{_lambda_.1} parent=1 // pred_fallthru
      _
    // Predicated region
    $region18: #{_lambda_.1} parent=1 // pred_check
      _
    $region19: #{_lambda_.1} parent=1 // pred_check_branch
      %37 = sbr.rel (0) target = $region21
    $region20: #{_lambda_.1} parent=1 // pred_region
      _
    $region21: #{_lambda_.1} parent=1 // pred_fallthru
      _
    // Predicated region
    $region22: #{_lambda_.1} parent=1 // pred_check
      _
    $region23: #{_lambda_.1} parent=1 // pred_check_branch
      %39 = sbr.rel (0) target = $region25
    $region24: #{_lambda_.1} parent=1 // pred_region
      _
    $region25: #{_lambda_.1} parent=1 // pred_fallthru
      _
    // Predicated region
    $region26: #{_lambda_.1} parent=1 // pred_check
      _
    $region27: #{_lambda_.1} parent=1 // pred_check_branch
      %41 = sbr.rel (0) target = $region29
    $region28: #{_lambda_.1} parent=1 // pred_region
      _
    $region29: #{_lambda_.1} parent=1 // pred_fallthru
      _
    // Predicated region
    $region30: #{_lambda_.1} parent=1 // pred_check
      _
    $region31: #{_lambda_.1} parent=1 // pred_check_branch
      %43 = sbr.rel (0) target = $region33
    $region32: #{_lambda_.1} parent=1 // pred_region
      _
    $region33: #{_lambda_.1} parent=1 // pred_fallthru
      _
    // Predicated region
    $region34: #{_lambda_.1} parent=1 // pred_check
      _
    $region35: #{_lambda_.1} parent=1 // pred_check_branch
      %45 = sbr.rel (0) target = $region37
    $region36: #{_lambda_.1} parent=1 // pred_region
      _
    $region37: #{_lambda_.1} parent=1 // pred_fallthru
      _
    // Predicated region
    $region38: #{_lambda_.1} parent=1 // pred_check
      _
    $region39: #{_lambda_.1} parent=1 // pred_check_branch
      %47 = sbr.rel (0) target = $region41
    $region40: #{_lambda_.1} parent=1 // pred_region
      _
    $region41: #{_lambda_.1} parent=1 // pred_fallthru
      _
    // Predicated region
    $region42: #{_lambda_.1} parent=1 // pred_check
      _
    $region43: #{_lambda_.1} parent=1 // pred_check_branch
      %49 = sbr.rel (0) target = $region45
    $region44: #{_lambda_.1} parent=1 // pred_region
      _
    $region45: #{_lambda_.1} parent=1 // pred_fallthru
      _
    // Predicated region
    $region46: #{_lambda_.1} parent=1 // pred_check
      _
    $region47: #{_lambda_.1} parent=1 // pred_check_branch
      %51 = sbr.rel (0) target = $region49
    $region48: #{_lambda_.1} parent=1 // pred_region
      _
    $region49: #{_lambda_.1} parent=1 // pred_fallthru
      _
    // Predicated region
    $region50: #{_lambda_.1} parent=1 // pred_check
      _
    $region51: #{_lambda_.1} parent=1 // pred_check_branch
      %53 = sbr.rel (0) target = $region53
    $region52: #{_lambda_.1} parent=1 // pred_region
      _
    $region53: #{_lambda_.1} parent=1 // pred_fallthru
      _
    // Predicated region
    $region54: #{_lambda_.1} parent=1 // pred_check
      _
    $region55: #{_lambda_.1} parent=1 // pred_check_branch
      %55 = sbr.rel (0) target = $region57
    $region56: #{_lambda_.1} parent=1 // pred_region
      _
    $region57: #{_lambda_.1} parent=1 // pred_fallthru
      _
    // Predicated region
    $region58: #{_lambda_.1} parent=1 // pred_check
      _
    $region59: #{_lambda_.1} parent=1 // pred_check_branch
      %57 = sbr.rel (0) target = $region61
    $region60: #{_lambda_.1} parent=1 // pred_region
      _
    $region61: #{_lambda_.1} parent=1 // pred_fallthru
      _
    // Predicated region
    $region62: #{_lambda_.1} parent=1 // pred_check
      _
    $region63: #{_lambda_.1} parent=1 // pred_check_branch
      %59 = sbr.rel (0) target = $region65
    $region64: #{_lambda_.1} parent=1 // pred_region
      _
    $region65: #{_lambda_.1} parent=1 // pred_fallthru
      _
    // Predicated region
    $region66: #{_lambda_.1} parent=1 // pred_check
      _
    $region67: #{_lambda_.1} parent=1 // pred_check_branch
      %61 = sbr.rel (0) target = $region69
    $region68: #{_lambda_.1} parent=1 // pred_region
      _
    $region69: #{_lambda_.1} parent=1 // pred_fallthru
      _
    // Predicated region
    $region70: #{_lambda_.1} parent=1 // pred_check
      _
    $region71: #{_lambda_.1} parent=1 // pred_check_branch
      %63 = sbr.rel (0) target = $region73
    $region72: #{_lambda_.1} parent=1 // pred_region
      _
    $region73: #{_lambda_.1} parent=1 // pred_fallthru
      _
    %v64 = vld [vmem:[%s0] sm:$0xff]
    %v65 = vld [vmem:[%s0 + $0x8] sm:$0xff]
    %v66 = vld [vmem:[%s2] sm:$0xff]
    %v67 = vld [vmem:[%s2 + $0x8] sm:$0xff]
    %v68 = vld [vmem:[%s1] sm:$0xff]
    %v69 = vld [vmem:[%s1 + $0x8] sm:$0xff]
    %vm70 = vcmask 130048
    %v72 = vsel %vm70, %v64, 0
    %v75 = vsel %vm70, %v65, 0
    %77 = vmatprep.subr.mxu0 0.0
    %78 = vmatpush1.msra.mxu0 0.0
    %79 = vmatprep.subr.mxu0 0.0
    %80 = vmatpush1.msra.mxu0 0.0
    %81 = vmatprep.subr.mxu0 0.0
    %82 = vmatpush1.msra.mxu0 0.0
    %83 = vmatprep.subr.mxu0 0.0
    %84 = vmatpush1.msra.mxu0 0.0
    %85 = vmatprep.subr.mxu0 0.0
    %86 = vmatpush1.msra.mxu0 0.0
    %87 = vmatprep.subr.mxu0 0.0
    %88 = vmatpush1.msra.mxu0 0.0
    %89 = vmatprep.subr.mxu0 0.0
    %90 = vmatpush1.msra.mxu0 0.0
    %91 = vmatprep.subr.mxu0 0.0
    %92 = vmatpush1.msra.mxu0 0.0
    %93 = vmatprep.subr.mxu0 0.0
    %94 = vmatpush1.msra.mxu0 0.0
    %95 = vmatprep.subr.mxu0 0.0
    %96 = vmatpush1.msra.mxu0 0.0
    %97 = vmatprep.subr.mxu0 0.0
    %98 = vmatpush1.msra.mxu0 0.0
    %99 = vmatprep.subr.mxu0 0.0
    %100 = vmatpush1.msra.mxu0 0.0
    %101 = vmatprep.subr.mxu0 0.0
    %102 = vmatpush1.msra.mxu0 0.0
    %103 = vmatprep.subr.mxu0 0.0
    %104 = vmatpush1.msra.mxu0 0.0
    %105 = vmatprep.subr.mxu0 0.0
    %106 = vmatpush1.msra.mxu0 %v67
    %107 = vmatprep.subr.mxu0 0.0
    %108 = vmatpush1.msra.mxu0 %v66
    %109 = vmatprep.subr.mxu0 0.0
    %110 = vmatpush2.msra.mxu0 0.0
    %111 = vmatprep.subr.mxu0 0.0
    %112 = vmatpush2.msra.mxu0 0.0
    %113 = vmatprep.subr.mxu0 0.0
    %114 = vmatpush2.msra.mxu0 0.0
    %115 = vmatprep.subr.mxu0 0.0
    %116 = vmatpush2.msra.mxu0 0.0
    %117 = vmatprep.subr.mxu0 0.0
    %118 = vmatpush2.msra.mxu0 0.0
    %119 = vmatprep.subr.mxu0 0.0
    %120 = vmatpush2.msra.mxu0 0.0
    %121 = vmatprep.subr.mxu0 0.0
    %122 = vmatpush2.msra.mxu0 0.0
    %123 = vmatprep.subr.mxu0 0.0
    %124 = vmatpush2.msra.mxu0 0.0
    %125 = vmatprep.subr.mxu0 0.0
    %126 = vmatpush2.msra.mxu0 0.0
    %127 = vmatprep.subr.mxu0 0.0
    %128 = vmatpush2.msra.mxu0 0.0
    %129 = vmatprep.subr.mxu0 0.0
    %130 = vmatpush2.msra.mxu0 0.0
    %131 = vmatprep.subr.mxu0 0.0
    %132 = vmatpush2.msra.mxu0 0.0
    %133 = vmatprep.subr.mxu0 0.0
    %134 = vmatpush2.msra.mxu0 0.0
    %135 = vmatprep.subr.mxu0 0.0
    %136 = vmatpush2.msra.mxu0 0.0
    %137 = vmatprep.subr.mxu0 0.0
    %138 = vmatpush2.msra.mxu0 0.0
    %139 = vmatprep.subr.mxu0 0.0
    %140 = vmatpush2.msra.mxu0 0.0
    %141 = vmatprep.mubr.f32.mxu0 0.0
    %142 = vmatmul.mubr.f32.gmra.mxu0 %v72
    %v143 = vpop.f32.mrf.mxu0
    %v144 = vadd.f32 %v68, %v143
    %v145 = vpop.f32.mrf.mxu0
    %146 = vmatprep.mubr.f32.mxu0 0.0
    %147 = vmatmul.mubr.f32.gmra.mxu0 %v75
    %v148 = vpop.f32.mrf.mxu0
    %v149 = vadd.f32 %v69, %v148
    %v150 = vpop.f32.mrf.mxu0
    %151 = vdwg.mxu0
    %v152 = vld [vmem:[%s3] sm:$0x1]
    %v154 = vlaneseq
    %v155 = vshrl.u32 %v154, 7
    %v156 = vsub.s32 0, %v155
    %v157 = vrot.slane %v152, %v156
    %v159 = vadd.f32 %v144, %v157
    %v160 = vadd.f32 %v149, %v157
    %v161 = vld [vmem:[%s4] sm:$0xff]
    %v162 = vld [vmem:[%s4 + $0x8] sm:$0xff]
    %v163 = vld [vmem:[%s4 + $0x10] sm:$0xff]
    %v164 = vld [vmem:[%s4 + $0x18] sm:$0xff]
    %v165 = vld [vmem:[%s5] sm:$0x1]
    %vm166 = vcmask 261120
    %v168 = vsel %vm166, 0.0, 0
    %170 = vmatprep.subr.mxu0 0.0
    %171 = vmatpush1.msra.mxu0 0.0
    %172 = vmatprep.subr.mxu0 0.0
    %173 = vmatpush1.msra.mxu0 0.0
    %174 = vmatprep.subr.mxu0 0.0
    %175 = vmatpush1.msra.mxu0 0.0
    %176 = vmatprep.subr.mxu0 0.0
    %177 = vmatpush1.msra.mxu0 0.0
    %178 = vmatprep.subr.mxu0 0.0
    %179 = vmatpush1.msra.mxu0 0.0
    %180 = vmatprep.subr.mxu0 0.0
    %181 = vmatpush1.msra.mxu0 0.0
    %182 = vmatprep.subr.mxu0 0.0
    %183 = vmatpush1.msra.mxu0 0.0
    %184 = vmatprep.subr.mxu0 0.0
    %185 = vmatpush1.msra.mxu0 0.0
    %186 = vmatprep.subr.mxu0 0.0
    %187 = vmatpush1.msra.mxu0 0.0
    %188 = vmatprep.subr.mxu0 0.0
    %189 = vmatpush1.msra.mxu0 0.0
    %190 = vmatprep.subr.mxu0 0.0
    %191 = vmatpush1.msra.mxu0 0.0
    %192 = vmatprep.subr.mxu0 0.0
    %193 = vmatpush1.msra.mxu0 0.0
    %194 = vmatprep.subr.mxu0 0.0
    %195 = vmatpush1.msra.mxu0 %v164
    %196 = vmatprep.subr.mxu0 0.0
    %197 = vmatpush1.msra.mxu0 %v163
    %198 = vmatprep.subr.mxu0 0.0
    %199 = vmatpush1.msra.mxu0 %v162
    %200 = vmatprep.subr.mxu0 0.0
    %201 = vmatpush1.msra.mxu0 %v161
    %202 = vmatprep.subr.mxu0 0.0
    %203 = vmatpush2.msra.mxu0 0.0
    %204 = vmatprep.subr.mxu0 0.0
    %205 = vmatpush2.msra.mxu0 0.0
    %206 = vmatprep.subr.mxu0 0.0
    %207 = vmatpush2.msra.mxu0 0.0
    %208 = vmatprep.subr.mxu0 0.0
    %209 = vmatpush2.msra.mxu0 0.0
    %210 = vmatprep.subr.mxu0 0.0
    %211 = vmatpush2.msra.mxu0 0.0
    %212 = vmatprep.subr.mxu0 0.0
    %213 = vmatpush2.msra.mxu0 0.0
    %214 = vmatprep.subr.mxu0 0.0
    %215 = vmatpush2.msra.mxu0 0.0
    %216 = vmatprep.subr.mxu0 0.0
    %217 = vmatpush2.msra.mxu0 0.0
    %218 = vmatprep.subr.mxu0 0.0
    %219 = vmatpush2.msra.mxu0 0.0
    %220 = vmatprep.subr.mxu0 0.0
    %221 = vmatpush2.msra.mxu0 0.0
    %222 = vmatprep.subr.mxu0 0.0
    %223 = vmatpush2.msra.mxu0 0.0
    %224 = vmatprep.subr.mxu0 0.0
    %225 = vmatpush2.msra.mxu0 0.0
    %226 = vmatprep.subr.mxu0 0.0
    %227 = vmatpush2.msra.mxu0 0.0
    %228 = vmatprep.subr.mxu0 0.0
    %229 = vmatpush2.msra.mxu0 0.0
    %230 = vmatprep.subr.mxu0 0.0
    %231 = vmatpush2.msra.mxu0 0.0
    %232 = vmatprep.subr.mxu0 0.0
    %233 = vmatpush2.msra.mxu0 0.0
    %234 = vmatprep.mubr.f32.mxu0 0.0
    %235 = vmatmul.mubr.f32.gmra.mxu0 %v168
    %v236 = vpop.f32.mrf.mxu0
    %v237 = vadd.f32 0.0, %v236
    %v238 = vpop.f32.mrf.mxu0
    %239 = vdwg.mxu0
    %v241 = vrot.slane %v237, 1
    %v244 = vadd.f32 %v159, %v237
    %v245 = vadd.f32 %v160, %v241
    %v246 = vxor.u32 %v244, 2147483648
    %v247 = vxor.u32 %v245, 2147483648
    %v248 = vmul.f32 %v246, 1.442695
    %v249 = vpow.pop %v248
    %v250 = vmul.f32 %v247, 1.442695
    %v251 = vpow.pop %v250
    %v252 = vadd.f32 %v249, 1.0
    %v253 = vadd.f32 %v251, 1.0
    %v254 = vrcp.pop %v252
    %v255 = vmul.f32 1.0, %v254
    %v256 = vrcp.pop %v253
    %v257 = vmul.f32 1.0, %v256
    %v259 = vlaneseq
    %v260 = vshrl.u32 %v259, 7
    %v261 = vsub.s32 0, %v260
    %v262 = vrot.slane %v165, %v261
    %263 = vrot.lane.b32.xlu0 %v262, 64
    %v264 = vpop.permute.xlu0 %263
    %v266 = vadd.f32 %v237, %v264
    %v268 = vrot.slane %v266, 1
    %269 = vrot.lane.b32.xlu0 %v266, 64
    %v270 = vpop.permute.xlu0 %269
    %271 = vrot.lane.b32.xlu0 %v268, 64
    %v272 = vpop.permute.xlu0 %271
    %v275 = vmul.f32 %v255, %v270
    %v276 = vmul.f32 %v257, %v272
    %279 = vrot.lane.b32.xlu0 %v275, 64
    %v280 = vpop.permute.xlu0 %279
    %281 = vrot.lane.b32.xlu0 %v276, 64
    %v282 = vpop.permute.xlu0 %281
    %v285 = vadd.f32 %v159, %v280
    %v286 = vadd.f32 %v160, %v282
    %v287 = vtanh.pop %v285
    %v288 = vtanh.pop %v286
    %v289 = vsub.f32 1.0, %v255
    %v290 = vsub.f32 1.0, %v257
    %293 = vrot.lane.b32.xlu0 %v287, 96
    %v294 = vpop.permute.xlu0 %293
    %295 = vrot.lane.b32.xlu0 %v288, 96
    %v296 = vpop.permute.xlu0 %295
    %v299 = vmul.f32 %v289, %v294
    %v300 = vmul.f32 %v290, %v296
    %v301 = vmul.f32 %v255, 0.0
    %v302 = vmul.f32 %v257, 0.0
    %v303 = vadd.f32 %v299, %v301
    %v304 = vadd.f32 %v300, %v302
    %307 = vrot.lane.b32.xlu0 %v303, 96
    %v308 = vpop.permute.xlu0 %307
    %309 = vrot.lane.b32.xlu0 %v304, 96
    %v310 = vpop.permute.xlu0 %309
    %vm313 = vcmask 253952
    %314 = vst.msk [vmem:[#allocation2] sm:$0x1] %vm313, %v308
    %315 = vst.msk [vmem:[#allocation2 + $0x8] sm:$0x1] %vm313, %v310
    %v316 = vrot.slane %v304, 7
    %vm317 = vcmask 1041409
    %v318 = vsel %vm317, %v316, %v303
    %319 = vrot.lane.b32.xlu0 %v318, 96
    %v320 = vpop.permute.xlu0 %319
    %v321 = vsel %vm166, %v320, 0
    %323 = vmatprep.subr.mxu0 0.0
    %324 = vmatpush1.msra.mxu0 0.0
    %325 = vmatprep.subr.mxu0 0.0
    %326 = vmatpush1.msra.mxu0 0.0
    %327 = vmatprep.subr.mxu0 0.0
    %328 = vmatpush1.msra.mxu0 0.0
    %329 = vmatprep.subr.mxu0 0.0
    %330 = vmatpush1.msra.mxu0 0.0
    %331 = vmatprep.subr.mxu0 0.0
    %332 = vmatpush1.msra.mxu0 0.0
    %333 = vmatprep.subr.mxu0 0.0
    %334 = vmatpush1.msra.mxu0 0.0
    %335 = vmatprep.subr.mxu0 0.0
    %336 = vmatpush1.msra.mxu0 0.0
    %337 = vmatprep.subr.mxu0 0.0
    %338 = vmatpush1.msra.mxu0 0.0
    %339 = vmatprep.subr.mxu0 0.0
    %340 = vmatpush1.msra.mxu0 0.0
    %341 = vmatprep.subr.mxu0 0.0
    %342 = vmatpush1.msra.mxu0 0.0
    %343 = vmatprep.subr.mxu0 0.0
    %344 = vmatpush1.msra.mxu0 0.0
    %345 = vmatprep.subr.mxu0 0.0
    %346 = vmatpush1.msra.mxu0 0.0
    %347 = vmatprep.subr.mxu0 0.0
    %348 = vmatpush1.msra.mxu0 %v164
    %349 = vmatprep.subr.mxu0 0.0
    %350 = vmatpush1.msra.mxu0 %v163
    %351 = vmatprep.subr.mxu0 0.0
    %352 = vmatpush1.msra.mxu0 %v162
    %353 = vmatprep.subr.mxu0 0.0
    %354 = vmatpush1.msra.mxu0 %v161
    %355 = vmatprep.subr.mxu0 0.0
    %356 = vmatpush2.msra.mxu0 0.0
    %357 = vmatprep.subr.mxu0 0.0
    %358 = vmatpush2.msra.mxu0 0.0
    %359 = vmatprep.subr.mxu0 0.0
    %360 = vmatpush2.msra.mxu0 0.0
    %361 = vmatprep.subr.mxu0 0.0
    %362 = vmatpush2.msra.mxu0 0.0
    %363 = vmatprep.subr.mxu0 0.0
    %364 = vmatpush2.msra.mxu0 0.0
    %365 = vmatprep.subr.mxu0 0.0
    %366 = vmatpush2.msra.mxu0 0.0
    %367 = vmatprep.subr.mxu0 0.0
    %368 = vmatpush2.msra.mxu0 0.0
    %369 = vmatprep.subr.mxu0 0.0
    %370 = vmatpush2.msra.mxu0 0.0
    %371 = vmatprep.subr.mxu0 0.0
    %372 = vmatpush2.msra.mxu0 0.0
    %373 = vmatprep.subr.mxu0 0.0
    %374 = vmatpush2.msra.mxu0 0.0
    %375 = vmatprep.subr.mxu0 0.0
    %376 = vmatpush2.msra.mxu0 0.0
    %377 = vmatprep.subr.mxu0 0.0
    %378 = vmatpush2.msra.mxu0 0.0
    %379 = vmatprep.subr.mxu0 0.0
    %380 = vmatpush2.msra.mxu0 0.0
    %381 = vmatprep.subr.mxu0 0.0
    %382 = vmatpush2.msra.mxu0 0.0
    %383 = vmatprep.subr.mxu0 0.0
    %384 = vmatpush2.msra.mxu0 0.0
    %385 = vmatprep.subr.mxu0 0.0
    %386 = vmatpush2.msra.mxu0 0.0
    %387 = vmatprep.mubr.f32.mxu0 0.0
    %388 = vmatmul.mubr.f32.gmra.mxu0 %v321
    %v389 = vpop.f32.mrf.mxu0
    %v390 = vadd.f32 0.0, %v389
    %v391 = vpop.f32.mrf.mxu0
    %392 = vdwg.mxu0
    %v394 = vrot.slane %v390, 7
    %v397 = vadd.f32 %v159, %v394
    %v398 = vadd.f32 %v160, %v390
    %v399 = vxor.u32 %v397, 2147483648
    %v400 = vxor.u32 %v398, 2147483648
    %v401 = vmul.f32 %v399, 1.442695
    %v402 = vpow.pop %v401
    %v403 = vmul.f32 %v400, 1.442695
    %v404 = vpow.pop %v403
    %v405 = vadd.f32 %v402, 1.0
    %v406 = vadd.f32 %v404, 1.0
    %v407 = vrcp.pop %v405
    %v408 = vmul.f32 1.0, %v407
    %v409 = vrcp.pop %v406
    %v410 = vmul.f32 1.0, %v409
    %v411 = vadd.f32 %v390, %v264
    %v413 = vrot.slane %v411, 7
    %414 = vrot.lane.b32.xlu0 %v413, 64
    %v415 = vpop.permute.xlu0 %414
    %416 = vrot.lane.b32.xlu0 %v411, 64
    %v417 = vpop.permute.xlu0 %416
    %v420 = vmul.f32 %v408, %v415
    %v421 = vmul.f32 %v410, %v417
    %424 = vrot.lane.b32.xlu0 %v420, 64
    %v425 = vpop.permute.xlu0 %424
    %426 = vrot.lane.b32.xlu0 %v421, 64
    %v427 = vpop.permute.xlu0 %426
    %v430 = vadd.f32 %v159, %v425
    %v431 = vadd.f32 %v160, %v427
    %v432 = vtanh.pop %v430
    %v433 = vtanh.pop %v431
    %v434 = vsub.f32 1.0, %v408
    %v435 = vsub.f32 1.0, %v410
    %438 = vrot.lane.b32.xlu0 %v432, 96
    %v439 = vpop.permute.xlu0 %438
    %440 = vrot.lane.b32.xlu0 %v433, 96
    %v441 = vpop.permute.xlu0 %440
    %v444 = vmul.f32 %v434, %v439
    %v445 = vmul.f32 %v435, %v441
    %v446 = vrot.slane %v303, 7
    %v449 = vmul.f32 %v408, %v446
    %v450 = vmul.f32 %v410, %v316
    %v451 = vadd.f32 %v444, %v449
    %v452 = vadd.f32 %v445, %v450
    %455 = vrot.lane.b32.xlu0 %v451, 96
    %v456 = vpop.permute.xlu0 %455
    %457 = vrot.lane.b32.xlu0 %v452, 96
    %v458 = vpop.permute.xlu0 %457
    %vm461 = vcmask 254977
    %462 = vst.msk [vmem:[#allocation2] sm:$0x2] %vm461, %v456
    %463 = vst.msk [vmem:[#allocation2 + $0x8] sm:$0x2] %vm461, %v458
    %v464 = vrot.slane %v451, 1
    %v465 = vsel %vm317, %v452, %v464
    %466 = vrot.lane.b32.xlu0 %v465, 96
    %v467 = vpop.permute.xlu0 %466
    %v468 = vsel %vm166, %v467, 0
    %470 = vmatprep.subr.mxu0 0.0
    %471 = vmatpush1.msra.mxu0 0.0
    %472 = vmatprep.subr.mxu0 0.0
    %473 = vmatpush1.msra.mxu0 0.0
    %474 = vmatprep.subr.mxu0 0.0
    %475 = vmatpush1.msra.mxu0 0.0
    %476 = vmatprep.subr.mxu0 0.0
    %477 = vmatpush1.msra.mxu0 0.0
    %478 = vmatprep.subr.mxu0 0.0
    %479 = vmatpush1.msra.mxu0 0.0
    %480 = vmatprep.subr.mxu0 0.0
    %481 = vmatpush1.msra.mxu0 0.0
    %482 = vmatprep.subr.mxu0 0.0
    %483 = vmatpush1.msra.mxu0 0.0
    %484 = vmatprep.subr.mxu0 0.0
    %485 = vmatpush1.msra.mxu0 0.0
    %486 = vmatprep.subr.mxu0 0.0
    %487 = vmatpush1.msra.mxu0 0.0
    %488 = vmatprep.subr.mxu0 0.0
    %489 = vmatpush1.msra.mxu0 0.0
    %490 = vmatprep.subr.mxu0 0.0
    %491 = vmatpush1.msra.mxu0 0.0
    %492 = vmatprep.subr.mxu0 0.0
    %493 = vmatpush1.msra.mxu0 0.0
    %494 = vmatprep.subr.mxu0 0.0
    %495 = vmatpush1.msra.mxu0 %v164
    %496 = vmatprep.subr.mxu0 0.0
    %497 = vmatpush1.msra.mxu0 %v163
    %498 = vmatprep.subr.mxu0 0.0
    %499 = vmatpush1.msra.mxu0 %v162
    %500 = vmatprep.subr.mxu0 0.0
    %501 = vmatpush1.msra.mxu0 %v161
    %502 = vmatprep.subr.mxu0 0.0
    %503 = vmatpush2.msra.mxu0 0.0
    %504 = vmatprep.subr.mxu0 0.0
    %505 = vmatpush2.msra.mxu0 0.0
    %506 = vmatprep.subr.mxu0 0.0
    %507 = vmatpush2.msra.mxu0 0.0
    %508 = vmatprep.subr.mxu0 0.0
    %509 = vmatpush2.msra.mxu0 0.0
    %510 = vmatprep.subr.mxu0 0.0
    %511 = vmatpush2.msra.mxu0 0.0
    %512 = vmatprep.subr.mxu0 0.0
    %513 = vmatpush2.msra.mxu0 0.0
    %514 = vmatprep.subr.mxu0 0.0
    %515 = vmatpush2.msra.mxu0 0.0
    %516 = vmatprep.subr.mxu0 0.0
    %517 = vmatpush2.msra.mxu0 0.0
    %518 = vmatprep.subr.mxu0 0.0
    %519 = vmatpush2.msra.mxu0 0.0
    %520 = vmatprep.subr.mxu0 0.0
    %521 = vmatpush2.msra.mxu0 0.0
    %522 = vmatprep.subr.mxu0 0.0
    %523 = vmatpush2.msra.mxu0 0.0
    %524 = vmatprep.subr.mxu0 0.0
    %525 = vmatpush2.msra.mxu0 0.0
    %526 = vmatprep.subr.mxu0 0.0
    %527 = vmatpush2.msra.mxu0 0.0
    %528 = vmatprep.subr.mxu0 0.0
    %529 = vmatpush2.msra.mxu0 0.0
    %530 = vmatprep.subr.mxu0 0.0
    %531 = vmatpush2.msra.mxu0 0.0
    %532 = vmatprep.subr.mxu0 0.0
    %533 = vmatpush2.msra.mxu0 0.0
    %534 = vmatprep.mubr.f32.mxu0 0.0
    %535 = vmatmul.mubr.f32.gmra.mxu0 %v468
    %v536 = vpop.f32.mrf.mxu0
    %v537 = vadd.f32 0.0, %v536
    %v538 = vpop.f32.mrf.mxu0
    %539 = vdwg.mxu0
    %v541 = vrot.slane %v537, 6
    %v542 = vrot.slane %v537, 7
    %v545 = vadd.f32 %v159, %v541
    %v546 = vadd.f32 %v160, %v542
    %v547 = vxor.u32 %v545, 2147483648
    %v548 = vxor.u32 %v546, 2147483648
    %v549 = vmul.f32 %v547, 1.442695
    %v550 = vpow.pop %v549
    %v551 = vmul.f32 %v548, 1.442695
    %v552 = vpow.pop %v551
    %v553 = vadd.f32 %v550, 1.0
    %v554 = vadd.f32 %v552, 1.0
    %v555 = vrcp.pop %v553
    %v556 = vmul.f32 1.0, %v555
    %v557 = vrcp.pop %v554
    %v558 = vmul.f32 1.0, %v557
    %v559 = vadd.f32 %v537, %v264
    %v561 = vrot.slane %v559, 6
    %v562 = vrot.slane %v559, 7
    %563 = vrot.lane.b32.xlu0 %v561, 64
    %v564 = vpop.permute.xlu0 %563
    %565 = vrot.lane.b32.xlu0 %v562, 64
    %v566 = vpop.permute.xlu0 %565
    %v569 = vmul.f32 %v556, %v564
    %v570 = vmul.f32 %v558, %v566
    %573 = vrot.lane.b32.xlu0 %v569, 64
    %v574 = vpop.permute.xlu0 %573
    %575 = vrot.lane.b32.xlu0 %v570, 64
    %v576 = vpop.permute.xlu0 %575
    %v579 = vadd.f32 %v159, %v574
    %v580 = vadd.f32 %v160, %v576
    %v581 = vtanh.pop %v579
    %v582 = vtanh.pop %v580
    %v583 = vsub.f32 1.0, %v556
    %v584 = vsub.f32 1.0, %v558
    %587 = vrot.lane.b32.xlu0 %v581, 96
    %v588 = vpop.permute.xlu0 %587
    %589 = vrot.lane.b32.xlu0 %v582, 96
    %v590 = vpop.permute.xlu0 %589
    %v593 = vmul.f32 %v583, %v588
    %v594 = vmul.f32 %v584, %v590
    %v595 = vrot.slane %v451, 7
    %v596 = vrot.slane %v452, 7
    %v599 = vmul.f32 %v556, %v595
    %v600 = vmul.f32 %v558, %v596
    %v601 = vadd.f32 %v593, %v599
    %v602 = vadd.f32 %v594, %v600
    %605 = vrot.lane.b32.xlu0 %v601, 96
    %v606 = vpop.permute.xlu0 %605
    %607 = vrot.lane.b32.xlu0 %v602, 96
    %v608 = vpop.permute.xlu0 %607
    %vm611 = vcmask 256002
    %612 = vst.msk [vmem:[#allocation2] sm:$0x4] %vm611, %v606
    %613 = vst.msk [vmem:[#allocation2 + $0x8] sm:$0x4] %vm611, %v608
    %v614 = vrot.slane %v601, 2
    %v615 = vrot.slane %v602, 1
    %v616 = vsel %vm317, %v615, %v614
    %617 = vrot.lane.b32.xlu0 %v616, 96
    %v618 = vpop.permute.xlu0 %617
    %v619 = vsel %vm166, %v618, 0
    %621 = vmatprep.subr.mxu0 0.0
    %622 = vmatpush1.msra.mxu0 0.0
    %623 = vmatprep.subr.mxu0 0.0
    %624 = vmatpush1.msra.mxu0 0.0
    %625 = vmatprep.subr.mxu0 0.0
    %626 = vmatpush1.msra.mxu0 0.0
    %627 = vmatprep.subr.mxu0 0.0
    %628 = vmatpush1.msra.mxu0 0.0
    %629 = vmatprep.subr.mxu0 0.0
    %630 = vmatpush1.msra.mxu0 0.0
    %631 = vmatprep.subr.mxu0 0.0
    %632 = vmatpush1.msra.mxu0 0.0
    %633 = vmatprep.subr.mxu0 0.0
    %634 = vmatpush1.msra.mxu0 0.0
    %635 = vmatprep.subr.mxu0 0.0
    %636 = vmatpush1.msra.mxu0 0.0
    %637 = vmatprep.subr.mxu0 0.0
    %638 = vmatpush1.msra.mxu0 0.0
    %639 = vmatprep.subr.mxu0 0.0
    %640 = vmatpush1.msra.mxu0 0.0
    %641 = vmatprep.subr.mxu0 0.0
    %642 = vmatpush1.msra.mxu0 0.0
    %643 = vmatprep.subr.mxu0 0.0
    %644 = vmatpush1.msra.mxu0 0.0
    %645 = vmatprep.subr.mxu0 0.0
    %646 = vmatpush1.msra.mxu0 %v164
    %647 = vmatprep.subr.mxu0 0.0
    %648 = vmatpush1.msra.mxu0 %v163
    %649 = vmatprep.subr.mxu0 0.0
    %650 = vmatpush1.msra.mxu0 %v162
    %651 = vmatprep.subr.mxu0 0.0
    %652 = vmatpush1.msra.mxu0 %v161
    %653 = vmatprep.subr.mxu0 0.0
    %654 = vmatpush2.msra.mxu0 0.0
    %655 = vmatprep.subr.mxu0 0.0
    %656 = vmatpush2.msra.mxu0 0.0
    %657 = vmatprep.subr.mxu0 0.0
    %658 = vmatpush2.msra.mxu0 0.0
    %659 = vmatprep.subr.mxu0 0.0
    %660 = vmatpush2.msra.mxu0 0.0
    %661 = vmatprep.subr.mxu0 0.0
    %662 = vmatpush2.msra.mxu0 0.0
    %663 = vmatprep.subr.mxu0 0.0
    %664 = vmatpush2.msra.mxu0 0.0
    %665 = vmatprep.subr.mxu0 0.0
    %666 = vmatpush2.msra.mxu0 0.0
    %667 = vmatprep.subr.mxu0 0.0
    %668 = vmatpush2.msra.mxu0 0.0
    %669 = vmatprep.subr.mxu0 0.0
    %670 = vmatpush2.msra.mxu0 0.0
    %671 = vmatprep.subr.mxu0 0.0
    %672 = vmatpush2.msra.mxu0 0.0
    %673 = vmatprep.subr.mxu0 0.0
    %674 = vmatpush2.msra.mxu0 0.0
    %675 = vmatprep.subr.mxu0 0.0
    %676 = vmatpush2.msra.mxu0 0.0
    %677 = vmatprep.subr.mxu0 0.0
    %678 = vmatpush2.msra.mxu0 0.0
    %679 = vmatprep.subr.mxu0 0.0
    %680 = vmatpush2.msra.mxu0 0.0
    %681 = vmatprep.subr.mxu0 0.0
    %682 = vmatpush2.msra.mxu0 0.0
    %683 = vmatprep.subr.mxu0 0.0
    %684 = vmatpush2.msra.mxu0 0.0
    %685 = vmatprep.mubr.f32.mxu0 0.0
    %686 = vmatmul.mubr.f32.gmra.mxu0 %v619
    %v687 = vpop.f32.mrf.mxu0
    %v688 = vadd.f32 0.0, %v687
    %v689 = vpop.f32.mrf.mxu0
    %690 = vdwg.mxu0
    %v692 = vrot.slane %v688, 5
    %v693 = vrot.slane %v688, 6
    %v696 = vadd.f32 %v159, %v692
    %v697 = vadd.f32 %v160, %v693
    %v698 = vxor.u32 %v696, 2147483648
    %v699 = vxor.u32 %v697, 2147483648
    %v700 = vmul.f32 %v698, 1.442695
    %v701 = vpow.pop %v700
    %v702 = vmul.f32 %v699, 1.442695
    %v703 = vpow.pop %v702
    %v704 = vadd.f32 %v701, 1.0
    %v705 = vadd.f32 %v703, 1.0
    %v706 = vrcp.pop %v704
    %v707 = vmul.f32 1.0, %v706
    %v708 = vrcp.pop %v705
    %v709 = vmul.f32 1.0, %v708
    %v710 = vadd.f32 %v688, %v264
    %v712 = vrot.slane %v710, 5
    %v713 = vrot.slane %v710, 6
    %714 = vrot.lane.b32.xlu0 %v712, 64
    %v715 = vpop.permute.xlu0 %714
    %716 = vrot.lane.b32.xlu0 %v713, 64
    %v717 = vpop.permute.xlu0 %716
    %v720 = vmul.f32 %v707, %v715
    %v721 = vmul.f32 %v709, %v717
    %724 = vrot.lane.b32.xlu0 %v720, 64
    %v725 = vpop.permute.xlu0 %724
    %726 = vrot.lane.b32.xlu0 %v721, 64
    %v727 = vpop.permute.xlu0 %726
    %v730 = vadd.f32 %v159, %v725
    %v731 = vadd.f32 %v160, %v727
    %v732 = vtanh.pop %v730
    %v733 = vtanh.pop %v731
    %v734 = vsub.f32 1.0, %v707
    %v735 = vsub.f32 1.0, %v709
    %738 = vrot.lane.b32.xlu0 %v732, 96
    %v739 = vpop.permute.xlu0 %738
    %740 = vrot.lane.b32.xlu0 %v733, 96
    %v741 = vpop.permute.xlu0 %740
    %v744 = vmul.f32 %v734, %v739
    %v745 = vmul.f32 %v735, %v741
    %v746 = vrot.slane %v601, 7
    %v747 = vrot.slane %v602, 7
    %v750 = vmul.f32 %v707, %v746
    %v751 = vmul.f32 %v709, %v747
    %v752 = vadd.f32 %v744, %v750
    %v753 = vadd.f32 %v745, %v751
    %756 = vrot.lane.b32.xlu0 %v752, 96
    %v757 = vpop.permute.xlu0 %756
    %758 = vrot.lane.b32.xlu0 %v753, 96
    %v759 = vpop.permute.xlu0 %758
    %vm762 = vcmask 257027
    %763 = vst.msk [vmem:[#allocation2] sm:$0x8] %vm762, %v757
    %764 = vst.msk [vmem:[#allocation2 + $0x8] sm:$0x8] %vm762, %v759
    %v765 = vrot.slane %v752, 3
    %v766 = vrot.slane %v753, 2
    %v767 = vsel %vm317, %v766, %v765
    %768 = vrot.lane.b32.xlu0 %v767, 96
    %v769 = vpop.permute.xlu0 %768
    %v770 = vsel %vm166, %v769, 0
    %772 = vmatprep.subr.mxu0 0.0
    %773 = vmatpush1.msra.mxu0 0.0
    %774 = vmatprep.subr.mxu0 0.0
    %775 = vmatpush1.msra.mxu0 0.0
    %776 = vmatprep.subr.mxu0 0.0
    %777 = vmatpush1.msra.mxu0 0.0
    %778 = vmatprep.subr.mxu0 0.0
    %779 = vmatpush1.msra.mxu0 0.0
    %780 = vmatprep.subr.mxu0 0.0
    %781 = vmatpush1.msra.mxu0 0.0
    %782 = vmatprep.subr.mxu0 0.0
    %783 = vmatpush1.msra.mxu0 0.0
    %784 = vmatprep.subr.mxu0 0.0
    %785 = vmatpush1.msra.mxu0 0.0
    %786 = vmatprep.subr.mxu0 0.0
    %787 = vmatpush1.msra.mxu0 0.0
    %788 = vmatprep.subr.mxu0 0.0
    %789 = vmatpush1.msra.mxu0 0.0
    %790 = vmatprep.subr.mxu0 0.0
    %791 = vmatpush1.msra.mxu0 0.0
    %792 = vmatprep.subr.mxu0 0.0
    %793 = vmatpush1.msra.mxu0 0.0
    %794 = vmatprep.subr.mxu0 0.0
    %795 = vmatpush1.msra.mxu0 0.0
    %796 = vmatprep.subr.mxu0 0.0
    %797 = vmatpush1.msra.mxu0 %v164
    %798 = vmatprep.subr.mxu0 0.0
    %799 = vmatpush1.msra.mxu0 %v163
    %800 = vmatprep.subr.mxu0 0.0
    %801 = vmatpush1.msra.mxu0 %v162
    %802 = vmatprep.subr.mxu0 0.0
    %803 = vmatpush1.msra.mxu0 %v161
    %804 = vmatprep.subr.mxu0 0.0
    %805 = vmatpush2.msra.mxu0 0.0
    %806 = vmatprep.subr.mxu0 0.0
    %807 = vmatpush2.msra.mxu0 0.0
    %808 = vmatprep.subr.mxu0 0.0
    %809 = vmatpush2.msra.mxu0 0.0
    %810 = vmatprep.subr.mxu0 0.0
    %811 = vmatpush2.msra.mxu0 0.0
    %812 = vmatprep.subr.mxu0 0.0
    %813 = vmatpush2.msra.mxu0 0.0
    %814 = vmatprep.subr.mxu0 0.0
    %815 = vmatpush2.msra.mxu0 0.0
    %816 = vmatprep.subr.mxu0 0.0
    %817 = vmatpush2.msra.mxu0 0.0
    %818 = vmatprep.subr.mxu0 0.0
    %819 = vmatpush2.msra.mxu0 0.0
    %820 = vmatprep.subr.mxu0 0.0
    %821 = vmatpush2.msra.mxu0 0.0
    %822 = vmatprep.subr.mxu0 0.0
    %823 = vmatpush2.msra.mxu0 0.0
    %824 = vmatprep.subr.mxu0 0.0
    %825 = vmatpush2.msra.mxu0 0.0
    %826 = vmatprep.subr.mxu0 0.0
    %827 = vmatpush2.msra.mxu0 0.0
    %828 = vmatprep.subr.mxu0 0.0
    %829 = vmatpush2.msra.mxu0 0.0
    %830 = vmatprep.subr.mxu0 0.0
    %831 = vmatpush2.msra.mxu0 0.0
    %832 = vmatprep.subr.mxu0 0.0
    %833 = vmatpush2.msra.mxu0 0.0
    %834 = vmatprep.subr.mxu0 0.0
    %835 = vmatpush2.msra.mxu0 0.0
    %836 = vmatprep.mubr.f32.mxu0 0.0
    %837 = vmatmul.mubr.f32.gmra.mxu0 %v770
    %v838 = vpop.f32.mrf.mxu0
    %v839 = vadd.f32 0.0, %v838
    %v840 = vpop.f32.mrf.mxu0
    %841 = vdwg.mxu0
    %v843 = vrot.slane %v839, 4
    %v844 = vrot.slane %v839, 5
    %v847 = vadd.f32 %v159, %v843
    %v848 = vadd.f32 %v160, %v844
    %v849 = vxor.u32 %v847, 2147483648
    %v850 = vxor.u32 %v848, 2147483648
    %v851 = vmul.f32 %v849, 1.442695
    %v852 = vpow.pop %v851
    %v853 = vmul.f32 %v850, 1.442695
    %v854 = vpow.pop %v853
    %v855 = vadd.f32 %v852, 1.0
    %v856 = vadd.f32 %v854, 1.0
    %v857 = vrcp.pop %v855
    %v858 = vmul.f32 1.0, %v857
    %v859 = vrcp.pop %v856
    %v860 = vmul.f32 1.0, %v859
    %v861 = vadd.f32 %v839, %v264
    %v863 = vrot.slane %v861, 4
    %v864 = vrot.slane %v861, 5
    %865 = vrot.lane.b32.xlu0 %v863, 64
    %v866 = vpop.permute.xlu0 %865
    %867 = vrot.lane.b32.xlu0 %v864, 64
    %v868 = vpop.permute.xlu0 %867
    %v871 = vmul.f32 %v858, %v866
    %v872 = vmul.f32 %v860, %v868
    %875 = vrot.lane.b32.xlu0 %v871, 64
    %v876 = vpop.permute.xlu0 %875
    %877 = vrot.lane.b32.xlu0 %v872, 64
    %v878 = vpop.permute.xlu0 %877
    %v881 = vadd.f32 %v159, %v876
    %v882 = vadd.f32 %v160, %v878
    %v883 = vtanh.pop %v881
    %v884 = vtanh.pop %v882
    %v885 = vsub.f32 1.0, %v858
    %v886 = vsub.f32 1.0, %v860
    %889 = vrot.lane.b32.xlu0 %v883, 96
    %v890 = vpop.permute.xlu0 %889
    %891 = vrot.lane.b32.xlu0 %v884, 96
    %v892 = vpop.permute.xlu0 %891
    %v895 = vmul.f32 %v885, %v890
    %v896 = vmul.f32 %v886, %v892
    %v897 = vrot.slane %v752, 7
    %v898 = vrot.slane %v753, 7
    %v901 = vmul.f32 %v858, %v897
    %v902 = vmul.f32 %v860, %v898
    %v903 = vadd.f32 %v895, %v901
    %v904 = vadd.f32 %v896, %v902
    %907 = vrot.lane.b32.xlu0 %v903, 96
    %v908 = vpop.permute.xlu0 %907
    %909 = vrot.lane.b32.xlu0 %v904, 96
    %v910 = vpop.permute.xlu0 %909
    %vm913 = vcmask 258052
    %914 = vst.msk [vmem:[#allocation2] sm:$0x10] %vm913, %v908
    %915 = vst.msk [vmem:[#allocation2 + $0x8] sm:$0x10] %vm913, %v910
    %v916 = vrot.slane %v903, 4
    %v917 = vrot.slane %v904, 3
    %v918 = vsel %vm317, %v917, %v916
    %919 = vrot.lane.b32.xlu0 %v918, 96
    %v920 = vpop.permute.xlu0 %919
    %v921 = vsel %vm166, %v920, 0
    %923 = vmatprep.subr.mxu0 0.0
    %924 = vmatpush1.msra.mxu0 0.0
    %925 = vmatprep.subr.mxu0 0.0
    %926 = vmatpush1.msra.mxu0 0.0
    %927 = vmatprep.subr.mxu0 0.0
    %928 = vmatpush1.msra.mxu0 0.0
    %929 = vmatprep.subr.mxu0 0.0
    %930 = vmatpush1.msra.mxu0 0.0
    %931 = vmatprep.subr.mxu0 0.0
    %932 = vmatpush1.msra.mxu0 0.0
    %933 = vmatprep.subr.mxu0 0.0
    %934 = vmatpush1.msra.mxu0 0.0
    %935 = vmatprep.subr.mxu0 0.0
    %936 = vmatpush1.msra.mxu0 0.0
    %937 = vmatprep.subr.mxu0 0.0
    %938 = vmatpush1.msra.mxu0 0.0
    %939 = vmatprep.subr.mxu0 0.0
    %940 = vmatpush1.msra.mxu0 0.0
    %941 = vmatprep.subr.mxu0 0.0
    %942 = vmatpush1.msra.mxu0 0.0
    %943 = vmatprep.subr.mxu0 0.0
    %944 = vmatpush1.msra.mxu0 0.0
    %945 = vmatprep.subr.mxu0 0.0
    %946 = vmatpush1.msra.mxu0 0.0
    %947 = vmatprep.subr.mxu0 0.0
    %948 = vmatpush1.msra.mxu0 %v164
    %949 = vmatprep.subr.mxu0 0.0
    %950 = vmatpush1.msra.mxu0 %v163
    %951 = vmatprep.subr.mxu0 0.0
    %952 = vmatpush1.msra.mxu0 %v162
    %953 = vmatprep.subr.mxu0 0.0
    %954 = vmatpush1.msra.mxu0 %v161
    %955 = vmatprep.subr.mxu0 0.0
    %956 = vmatpush2.msra.mxu0 0.0
    %957 = vmatprep.subr.mxu0 0.0
    %958 = vmatpush2.msra.mxu0 0.0
    %959 = vmatprep.subr.mxu0 0.0
    %960 = vmatpush2.msra.mxu0 0.0
    %961 = vmatprep.subr.mxu0 0.0
    %962 = vmatpush2.msra.mxu0 0.0
    %963 = vmatprep.subr.mxu0 0.0
    %964 = vmatpush2.msra.mxu0 0.0
    %965 = vmatprep.subr.mxu0 0.0
    %966 = vmatpush2.msra.mxu0 0.0
    %967 = vmatprep.subr.mxu0 0.0
    %968 = vmatpush2.msra.mxu0 0.0
    %969 = vmatprep.subr.mxu0 0.0
    %970 = vmatpush2.msra.mxu0 0.0
    %971 = vmatprep.subr.mxu0 0.0
    %972 = vmatpush2.msra.mxu0 0.0
    %973 = vmatprep.subr.mxu0 0.0
    %974 = vmatpush2.msra.mxu0 0.0
    %975 = vmatprep.subr.mxu0 0.0
    %976 = vmatpush2.msra.mxu0 0.0
    %977 = vmatprep.subr.mxu0 0.0
    %978 = vmatpush2.msra.mxu0 0.0
    %979 = vmatprep.subr.mxu0 0.0
    %980 = vmatpush2.msra.mxu0 0.0
    %981 = vmatprep.subr.mxu0 0.0
    %982 = vmatpush2.msra.mxu0 0.0
    %983 = vmatprep.subr.mxu0 0.0
    %984 = vmatpush2.msra.mxu0 0.0
    %985 = vmatprep.subr.mxu0 0.0
    %986 = vmatpush2.msra.mxu0 0.0
    %987 = vmatprep.mubr.f32.mxu0 0.0
    %988 = vmatmul.mubr.f32.gmra.mxu0 %v921
    %v989 = vpop.f32.mrf.mxu0
    %v990 = vadd.f32 0.0, %v989
    %v991 = vpop.f32.mrf.mxu0
    %992 = vdwg.mxu0
    %v994 = vrot.slane %v990, 3
    %v995 = vrot.slane %v990, 4
    %v998 = vadd.f32 %v159, %v994
    %v999 = vadd.f32 %v160, %v995
    %v1000 = vxor.u32 %v998, 2147483648
    %v1001 = vxor.u32 %v999, 2147483648
    %v1002 = vmul.f32 %v1000, 1.442695
    %v1003 = vpow.pop %v1002
    %v1004 = vmul.f32 %v1001, 1.442695
    %v1005 = vpow.pop %v1004
    %v1006 = vadd.f32 %v1003, 1.0
    %v1007 = vadd.f32 %v1005, 1.0
    %v1008 = vrcp.pop %v1006
    %v1009 = vmul.f32 1.0, %v1008
    %v1010 = vrcp.pop %v1007
    %v1011 = vmul.f32 1.0, %v1010
    %v1012 = vadd.f32 %v990, %v264
    %v1014 = vrot.slane %v1012, 3
    %v1015 = vrot.slane %v1012, 4
    %1016 = vrot.lane.b32.xlu0 %v1014, 64
    %v1017 = vpop.permute.xlu0 %1016
    %1018 = vrot.lane.b32.xlu0 %v1015, 64
    %v1019 = vpop.permute.xlu0 %1018
    %v1022 = vmul.f32 %v1009, %v1017
    %v1023 = vmul.f32 %v1011, %v1019
    %1026 = vrot.lane.b32.xlu0 %v1022, 64
    %v1027 = vpop.permute.xlu0 %1026
    %1028 = vrot.lane.b32.xlu0 %v1023, 64
    %v1029 = vpop.permute.xlu0 %1028
    %v1032 = vadd.f32 %v159, %v1027
    %v1033 = vadd.f32 %v160, %v1029
    %v1034 = vtanh.pop %v1032
    %v1035 = vtanh.pop %v1033
    %v1036 = vsub.f32 1.0, %v1009
    %v1037 = vsub.f32 1.0, %v1011
    %1040 = vrot.lane.b32.xlu0 %v1034, 96
    %v1041 = vpop.permute.xlu0 %1040
    %1042 = vrot.lane.b32.xlu0 %v1035, 96
    %v1043 = vpop.permute.xlu0 %1042
    %v1046 = vmul.f32 %v1036, %v1041
    %v1047 = vmul.f32 %v1037, %v1043
    %v1048 = vrot.slane %v903, 7
    %v1049 = vrot.slane %v904, 7
    %v1052 = vmul.f32 %v1009, %v1048
    %v1053 = vmul.f32 %v1011, %v1049
    %v1054 = vadd.f32 %v1046, %v1052
    %v1055 = vadd.f32 %v1047, %v1053
    %1058 = vrot.lane.b32.xlu0 %v1054, 96
    %v1059 = vpop.permute.xlu0 %1058
    %1060 = vrot.lane.b32.xlu0 %v1055, 96
    %v1061 = vpop.permute.xlu0 %1060
    %vm1064 = vcmask 259077
    %1065 = vst.msk [vmem:[#allocation2] sm:$0x20] %vm1064, %v1059
    %1066 = vst.msk [vmem:[#allocation2 + $0x8] sm:$0x20] %vm1064, %v1061
    %v1067 = vrot.slane %v1054, 5
    %v1068 = vrot.slane %v1055, 4
    %v1069 = vsel %vm317, %v1068, %v1067
    %1070 = vrot.lane.b32.xlu0 %v1069, 96
    %v1071 = vpop.permute.xlu0 %1070
    %v1072 = vsel %vm166, %v1071, 0
    %1074 = vmatprep.subr.mxu0 0.0
    %1075 = vmatpush1.msra.mxu0 0.0
    %1076 = vmatprep.subr.mxu0 0.0
    %1077 = vmatpush1.msra.mxu0 0.0
    %1078 = vmatprep.subr.mxu0 0.0
    %1079 = vmatpush1.msra.mxu0 0.0
    %1080 = vmatprep.subr.mxu0 0.0
    %1081 = vmatpush1.msra.mxu0 0.0
    %1082 = vmatprep.subr.mxu0 0.0
    %1083 = vmatpush1.msra.mxu0 0.0
    %1084 = vmatprep.subr.mxu0 0.0
    %1085 = vmatpush1.msra.mxu0 0.0
    %1086 = vmatprep.subr.mxu0 0.0
    %1087 = vmatpush1.msra.mxu0 0.0
    %1088 = vmatprep.subr.mxu0 0.0
    %1089 = vmatpush1.msra.mxu0 0.0
    %1090 = vmatprep.subr.mxu0 0.0
    %1091 = vmatpush1.msra.mxu0 0.0
    %1092 = vmatprep.subr.mxu0 0.0
    %1093 = vmatpush1.msra.mxu0 0.0
    %1094 = vmatprep.subr.mxu0 0.0
    %1095 = vmatpush1.msra.mxu0 0.0
    %1096 = vmatprep.subr.mxu0 0.0
    %1097 = vmatpush1.msra.mxu0 0.0
    %1098 = vmatprep.subr.mxu0 0.0
    %1099 = vmatpush1.msra.mxu0 %v164
    %1100 = vmatprep.subr.mxu0 0.0
    %1101 = vmatpush1.msra.mxu0 %v163
    %1102 = vmatprep.subr.mxu0 0.0
    %1103 = vmatpush1.msra.mxu0 %v162
    %1104 = vmatprep.subr.mxu0 0.0
    %1105 = vmatpush1.msra.mxu0 %v161
    %1106 = vmatprep.subr.mxu0 0.0
    %1107 = vmatpush2.msra.mxu0 0.0
    %1108 = vmatprep.subr.mxu0 0.0
    %1109 = vmatpush2.msra.mxu0 0.0
    %1110 = vmatprep.subr.mxu0 0.0
    %1111 = vmatpush2.msra.mxu0 0.0
    %1112 = vmatprep.subr.mxu0 0.0
    %1113 = vmatpush2.msra.mxu0 0.0
    %1114 = vmatprep.subr.mxu0 0.0
    %1115 = vmatpush2.msra.mxu0 0.0
    %1116 = vmatprep.subr.mxu0 0.0
    %1117 = vmatpush2.msra.mxu0 0.0
    %1118 = vmatprep.subr.mxu0 0.0
    %1119 = vmatpush2.msra.mxu0 0.0
    %1120 = vmatprep.subr.mxu0 0.0
    %1121 = vmatpush2.msra.mxu0 0.0
    %1122 = vmatprep.subr.mxu0 0.0
    %1123 = vmatpush2.msra.mxu0 0.0
    %1124 = vmatprep.subr.mxu0 0.0
    %1125 = vmatpush2.msra.mxu0 0.0
    %1126 = vmatprep.subr.mxu0 0.0
    %1127 = vmatpush2.msra.mxu0 0.0
    %1128 = vmatprep.subr.mxu0 0.0
    %1129 = vmatpush2.msra.mxu0 0.0
    %1130 = vmatprep.subr.mxu0 0.0
    %1131 = vmatpush2.msra.mxu0 0.0
    %1132 = vmatprep.subr.mxu0 0.0
    %1133 = vmatpush2.msra.mxu0 0.0
    %1134 = vmatprep.subr.mxu0 0.0
    %1135 = vmatpush2.msra.mxu0 0.0
    %1136 = vmatprep.subr.mxu0 0.0
    %1137 = vmatpush2.msra.mxu0 0.0
    %1138 = vmatprep.mubr.f32.mxu0 0.0
    %1139 = vmatmul.mubr.f32.gmra.mxu0 %v1072
    %v1140 = vpop.f32.mrf.mxu0
    %v1141 = vadd.f32 0.0, %v1140
    %v1142 = vpop.f32.mrf.mxu0
    %1143 = vdwg.mxu0
    %v1145 = vrot.slane %v1141, 2
    %v1146 = vrot.slane %v1141, 3
    %v1149 = vadd.f32 %v159, %v1145
    %v1150 = vadd.f32 %v160, %v1146
    %v1151 = vxor.u32 %v1149, 2147483648
    %v1152 = vxor.u32 %v1150, 2147483648
    %v1153 = vmul.f32 %v1151, 1.442695
    %v1154 = vpow.pop %v1153
    %v1155 = vmul.f32 %v1152, 1.442695
    %v1156 = vpow.pop %v1155
    %v1157 = vadd.f32 %v1154, 1.0
    %v1158 = vadd.f32 %v1156, 1.0
    %v1159 = vrcp.pop %v1157
    %v1160 = vmul.f32 1.0, %v1159
    %v1161 = vrcp.pop %v1158
    %v1162 = vmul.f32 1.0, %v1161
    %v1163 = vadd.f32 %v1141, %v264
    %v1165 = vrot.slane %v1163, 2
    %v1166 = vrot.slane %v1163, 3
    %1167 = vrot.lane.b32.xlu0 %v1165, 64
    %v1168 = vpop.permute.xlu0 %1167
    %1169 = vrot.lane.b32.xlu0 %v1166, 64
    %v1170 = vpop.permute.xlu0 %1169
    %v1173 = vmul.f32 %v1160, %v1168
    %v1174 = vmul.f32 %v1162, %v1170
    %1177 = vrot.lane.b32.xlu0 %v1173, 64
    %v1178 = vpop.permute.xlu0 %1177
    %1179 = vrot.lane.b32.xlu0 %v1174, 64
    %v1180 = vpop.permute.xlu0 %1179
    %v1183 = vadd.f32 %v159, %v1178
    %v1184 = vadd.f32 %v160, %v1180
    %v1185 = vtanh.pop %v1183
    %v1186 = vtanh.pop %v1184
    %v1187 = vsub.f32 1.0, %v1160
    %v1188 = vsub.f32 1.0, %v1162
    %1191 = vrot.lane.b32.xlu0 %v1185, 96
    %v1192 = vpop.permute.xlu0 %1191
    %1193 = vrot.lane.b32.xlu0 %v1186, 96
    %v1194 = vpop.permute.xlu0 %1193
    %v1197 = vmul.f32 %v1187, %v1192
    %v1198 = vmul.f32 %v1188, %v1194
    %v1199 = vrot.slane %v1054, 7
    %v1200 = vrot.slane %v1055, 7
    %v1203 = vmul.f32 %v1160, %v1199
    %v1204 = vmul.f32 %v1162, %v1200
    %v1205 = vadd.f32 %v1197, %v1203
    %v1206 = vadd.f32 %v1198, %v1204
    %1209 = vrot.lane.b32.xlu0 %v1205, 96
    %v1210 = vpop.permute.xlu0 %1209
    %1211 = vrot.lane.b32.xlu0 %v1206, 96
    %v1212 = vpop.permute.xlu0 %1211
    %vm1215 = vcmask 260102
    %1216 = vst.msk [vmem:[#allocation2] sm:$0x40] %vm1215, %v1210
    %1217 = vst.msk [vmem:[#allocation2 + $0x8] sm:$0x40] %vm1215, %v1212
    %v1218 = vrot.slane %v1205, 6
    %v1219 = vrot.slane %v1206, 5
    %v1220 = vsel %vm317, %v1219, %v1218
    %1221 = vrot.lane.b32.xlu0 %v1220, 96
    %v1222 = vpop.permute.xlu0 %1221
    %v1223 = vsel %vm166, %v1222, 0
    %1225 = vmatprep.subr.mxu0 0.0
    %1226 = vmatpush1.msra.mxu0 0.0
    %1227 = vmatprep.subr.mxu0 0.0
    %1228 = vmatpush1.msra.mxu0 0.0
    %1229 = vmatprep.subr.mxu0 0.0
    %1230 = vmatpush1.msra.mxu0 0.0
    %1231 = vmatprep.subr.mxu0 0.0
    %1232 = vmatpush1.msra.mxu0 0.0
    %1233 = vmatprep.subr.mxu0 0.0
    %1234 = vmatpush1.msra.mxu0 0.0
    %1235 = vmatprep.subr.mxu0 0.0
    %1236 = vmatpush1.msra.mxu0 0.0
    %1237 = vmatprep.subr.mxu0 0.0
    %1238 = vmatpush1.msra.mxu0 0.0
    %1239 = vmatprep.subr.mxu0 0.0
    %1240 = vmatpush1.msra.mxu0 0.0
    %1241 = vmatprep.subr.mxu0 0.0
    %1242 = vmatpush1.msra.mxu0 0.0
    %1243 = vmatprep.subr.mxu0 0.0
    %1244 = vmatpush1.msra.mxu0 0.0
    %1245 = vmatprep.subr.mxu0 0.0
    %1246 = vmatpush1.msra.mxu0 0.0
    %1247 = vmatprep.subr.mxu0 0.0
    %1248 = vmatpush1.msra.mxu0 0.0
    %1249 = vmatprep.subr.mxu0 0.0
    %1250 = vmatpush1.msra.mxu0 %v164
    %1251 = vmatprep.subr.mxu0 0.0
    %1252 = vmatpush1.msra.mxu0 %v163
    %1253 = vmatprep.subr.mxu0 0.0
    %1254 = vmatpush1.msra.mxu0 %v162
    %1255 = vmatprep.subr.mxu0 0.0
    %1256 = vmatpush1.msra.mxu0 %v161
    %1257 = vmatprep.subr.mxu0 0.0
    %1258 = vmatpush2.msra.mxu0 0.0
    %1259 = vmatprep.subr.mxu0 0.0
    %1260 = vmatpush2.msra.mxu0 0.0
    %1261 = vmatprep.subr.mxu0 0.0
    %1262 = vmatpush2.msra.mxu0 0.0
    %1263 = vmatprep.subr.mxu0 0.0
    %1264 = vmatpush2.msra.mxu0 0.0
    %1265 = vmatprep.subr.mxu0 0.0
    %1266 = vmatpush2.msra.mxu0 0.0
    %1267 = vmatprep.subr.mxu0 0.0
    %1268 = vmatpush2.msra.mxu0 0.0
    %1269 = vmatprep.subr.mxu0 0.0
    %1270 = vmatpush2.msra.mxu0 0.0
    %1271 = vmatprep.subr.mxu0 0.0
    %1272 = vmatpush2.msra.mxu0 0.0
    %1273 = vmatprep.subr.mxu0 0.0
    %1274 = vmatpush2.msra.mxu0 0.0
    %1275 = vmatprep.subr.mxu0 0.0
    %1276 = vmatpush2.msra.mxu0 0.0
    %1277 = vmatprep.subr.mxu0 0.0
    %1278 = vmatpush2.msra.mxu0 0.0
    %1279 = vmatprep.subr.mxu0 0.0
    %1280 = vmatpush2.msra.mxu0 0.0
    %1281 = vmatprep.subr.mxu0 0.0
    %1282 = vmatpush2.msra.mxu0 0.0
    %1283 = vmatprep.subr.mxu0 0.0
    %1284 = vmatpush2.msra.mxu0 0.0
    %1285 = vmatprep.subr.mxu0 0.0
    %1286 = vmatpush2.msra.mxu0 0.0
    %1287 = vmatprep.subr.mxu0 0.0
    %1288 = vmatpush2.msra.mxu0 0.0
    %1289 = vmatprep.mubr.f32.mxu0 0.0
    %1290 = vmatmul.mubr.f32.gmra.mxu0 %v1223
    %v1291 = vpop.f32.mrf.mxu0
    %v1292 = vadd.f32 0.0, %v1291
    %v1293 = vpop.f32.mrf.mxu0
    %1294 = vdwg.mxu0
    %v1296 = vrot.slane %v1292, 1
    %v1297 = vrot.slane %v1292, 2
    %v1300 = vadd.f32 %v159, %v1296
    %v1301 = vadd.f32 %v160, %v1297
    %v1302 = vxor.u32 %v1300, 2147483648
    %v1303 = vxor.u32 %v1301, 2147483648
    %v1304 = vmul.f32 %v1302, 1.442695
    %v1305 = vpow.pop %v1304
    %v1306 = vmul.f32 %v1303, 1.442695
    %v1307 = vpow.pop %v1306
    %v1308 = vadd.f32 %v1305, 1.0
    %v1309 = vadd.f32 %v1307, 1.0
    %v1310 = vrcp.pop %v1308
    %v1311 = vmul.f32 1.0, %v1310
    %v1312 = vrcp.pop %v1309
    %v1313 = vmul.f32 1.0, %v1312
    %v1314 = vadd.f32 %v1292, %v264
    %v1316 = vrot.slane %v1314, 1
    %v1317 = vrot.slane %v1314, 2
    %1318 = vrot.lane.b32.xlu0 %v1316, 64
    %v1319 = vpop.permute.xlu0 %1318
    %1320 = vrot.lane.b32.xlu0 %v1317, 64
    %v1321 = vpop.permute.xlu0 %1320
    %v1324 = vmul.f32 %v1311, %v1319
    %v1325 = vmul.f32 %v1313, %v1321
    %1328 = vrot.lane.b32.xlu0 %v1324, 64
    %v1329 = vpop.permute.xlu0 %1328
    %1330 = vrot.lane.b32.xlu0 %v1325, 64
    %v1331 = vpop.permute.xlu0 %1330
    %v1334 = vadd.f32 %v159, %v1329
    %v1335 = vadd.f32 %v160, %v1331
    %v1336 = vtanh.pop %v1334
    %v1337 = vtanh.pop %v1335
    %v1338 = vsub.f32 1.0, %v1311
    %v1339 = vsub.f32 1.0, %v1313
    %1342 = vrot.lane.b32.xlu0 %v1336, 96
    %v1343 = vpop.permute.xlu0 %1342
    %1344 = vrot.lane.b32.xlu0 %v1337, 96
    %v1345 = vpop.permute.xlu0 %1344
    %v1348 = vmul.f32 %v1338, %v1343
    %v1349 = vmul.f32 %v1339, %v1345
    %v1350 = vrot.slane %v1205, 7
    %v1351 = vrot.slane %v1206, 7
    %v1354 = vmul.f32 %v1311, %v1350
    %v1355 = vmul.f32 %v1313, %v1351
    %v1356 = vadd.f32 %v1348, %v1354
    %v1357 = vadd.f32 %v1349, %v1355
    %1360 = vrot.lane.b32.xlu0 %v1356, 96
    %v1361 = vpop.permute.xlu0 %1360
    %1362 = vrot.lane.b32.xlu0 %v1357, 96
    %v1363 = vpop.permute.xlu0 %1362
    %vm1366 = vcmask 261127
    %1367 = vst.msk [vmem:[#allocation2] sm:$0x80] %vm1366, %v1361
    %1368 = vst.msk [vmem:[#allocation2 + $0x8] sm:$0x80] %vm1366, %v1363
    %v1369 = vld [vmem:[#allocation2] sm:$0xff]
    %v1370 = vld [vmem:[#allocation2 + $0x8] sm:$0xff]
    %v1371 = vld [vmem:[%s6] sm:$0xff]
    %v1372 = vld [vmem:[%s6 + $0x8] sm:$0xff]
    %v1373 = vld [vmem:[%s6 + $0x10] sm:$0xff]
    %v1374 = vld [vmem:[%s6 + $0x18] sm:$0xff]
    %v1375 = vld [vmem:[%s7] sm:$0x1]
    %v1377 = vlaneseq
    %v1378 = vshrl.u32 %v1377, 7
    %v1379 = vsub.s32 0, %v1378
    %v1380 = vrot.slane %v1375, %v1379
    %v1383 = vsel %vm166, %v1369, 0
    %v1386 = vsel %vm166, %v1370, 0
    %1388 = vmatprep.subr.mxu0 0.0
    %1389 = vmatpush1.msra.mxu0 0.0
    %1390 = vmatprep.subr.mxu0 0.0
    %1391 = vmatpush1.msra.mxu0 0.0
    %1392 = vmatprep.subr.mxu0 0.0
    %1393 = vmatpush1.msra.mxu0 0.0
    %1394 = vmatprep.subr.mxu0 0.0
    %1395 = vmatpush1.msra.mxu0 0.0
    %1396 = vmatprep.subr.mxu0 0.0
    %1397 = vmatpush1.msra.mxu0 0.0
    %1398 = vmatprep.subr.mxu0 0.0
    %1399 = vmatpush1.msra.mxu0 0.0
    %1400 = vmatprep.subr.mxu0 0.0
    %1401 = vmatpush1.msra.mxu0 0.0
    %1402 = vmatprep.subr.mxu0 0.0
    %1403 = vmatpush1.msra.mxu0 0.0
    %1404 = vmatprep.subr.mxu0 0.0
    %1405 = vmatpush1.msra.mxu0 0.0
    %1406 = vmatprep.subr.mxu0 0.0
    %1407 = vmatpush1.msra.mxu0 0.0
    %1408 = vmatprep.subr.mxu0 0.0
    %1409 = vmatpush1.msra.mxu0 0.0
    %1410 = vmatprep.subr.mxu0 0.0
    %1411 = vmatpush1.msra.mxu0 0.0
    %1412 = vmatprep.subr.mxu0 0.0
    %1413 = vmatpush1.msra.mxu0 %v1374
    %1414 = vmatprep.subr.mxu0 0.0
    %1415 = vmatpush1.msra.mxu0 %v1373
    %1416 = vmatprep.subr.mxu0 0.0
    %1417 = vmatpush1.msra.mxu0 %v1372
    %1418 = vmatprep.subr.mxu0 0.0
    %1419 = vmatpush1.msra.mxu0 %v1371
    %1420 = vmatprep.subr.mxu0 0.0
    %1421 = vmatpush2.msra.mxu0 0.0
    %1422 = vmatprep.subr.mxu0 0.0
    %1423 = vmatpush2.msra.mxu0 0.0
    %1424 = vmatprep.subr.mxu0 0.0
    %1425 = vmatpush2.msra.mxu0 0.0
    %1426 = vmatprep.subr.mxu0 0.0
    %1427 = vmatpush2.msra.mxu0 0.0
    %1428 = vmatprep.subr.mxu0 0.0
    %1429 = vmatpush2.msra.mxu0 0.0
    %1430 = vmatprep.subr.mxu0 0.0
    %1431 = vmatpush2.msra.mxu0 0.0
    %1432 = vmatprep.subr.mxu0 0.0
    %1433 = vmatpush2.msra.mxu0 0.0
    %1434 = vmatprep.subr.mxu0 0.0
    %1435 = vmatpush2.msra.mxu0 0.0
    %1436 = vmatprep.subr.mxu0 0.0
    %1437 = vmatpush2.msra.mxu0 0.0
    %1438 = vmatprep.subr.mxu0 0.0
    %1439 = vmatpush2.msra.mxu0 0.0
    %1440 = vmatprep.subr.mxu0 0.0
    %1441 = vmatpush2.msra.mxu0 0.0
    %1442 = vmatprep.subr.mxu0 0.0
    %1443 = vmatpush2.msra.mxu0 0.0
    %1444 = vmatprep.subr.mxu0 0.0
    %1445 = vmatpush2.msra.mxu0 0.0
    %1446 = vmatprep.subr.mxu0 0.0
    %1447 = vmatpush2.msra.mxu0 0.0
    %1448 = vmatprep.subr.mxu0 0.0
    %1449 = vmatpush2.msra.mxu0 0.0
    %1450 = vmatprep.subr.mxu0 0.0
    %1451 = vmatpush2.msra.mxu0 0.0
    %1452 = vmatprep.mubr.f32.mxu0 0.0
    %1453 = vmatmul.mubr.f32.gmra.mxu0 %v1383
    %v1454 = vpop.f32.mrf.mxu0
    %v1455 = vadd.f32 %v1380, %v1454
    %v1456 = vpop.f32.mrf.mxu0
    %1457 = vmatprep.mubr.f32.mxu0 0.0
    %1458 = vmatmul.mubr.f32.gmra.mxu0 %v1386
    %v1459 = vpop.f32.mrf.mxu0
    %v1460 = vadd.f32 %v1380, %v1459
    %v1461 = vpop.f32.mrf.mxu0
    %1462 = vdwg.mxu0
    %vm1463 = vcmp.gt.f32.partialorder %v1455, 20.0
    %vm1464 = vcmp.gt.f32.partialorder %v1460, 20.0
    %v1465 = vmin.f32 %v1455, 20.0
    %v1466 = vmin.f32 %v1460, 20.0
    %v1467 = vmul.f32 %v1465, 1.442695
    %v1468 = vpow.pop %v1467
    %v1469 = vmul.f32 %v1466, 1.442695
    %v1470 = vpow.pop %v1469
    %v1471 = vadd.f32 %v1468, 1.0
    %v1472 = vlog2.pop %v1471
    %v1473 = vmul.f32 %v1472, 0.6931472
    %v1474 = vmul.f32 -0.5, %v1468
    %v1475 = vadd.f32 %v1474, 1.0
    %v1476 = vmul.f32 %v1475, %v1468
    %v1477 = vand.u32 2147483647, %v1468
    %vm1478 = vcmp.lt.f32.partialorder %v1477, 0.0004427343
    %v1479 = vsel %vm1478, %v1476, %v1473
    %v1480 = vadd.f32 %v1470, 1.0
    %v1481 = vlog2.pop %v1480
    %v1482 = vmul.f32 %v1481, 0.6931472
    %v1483 = vmul.f32 -0.5, %v1470
    %v1484 = vadd.f32 %v1483, 1.0
    %v1485 = vmul.f32 %v1484, %v1470
    %v1486 = vand.u32 2147483647, %v1470
    %vm1487 = vcmp.lt.f32.partialorder %v1486, 0.0004427343
    %v1488 = vsel %vm1487, %v1485, %v1482
    %v1489 = vsel %vm1463, %v1455, %v1479
    %v1490 = vsel %vm1464, %v1460, %v1488
    %v1493 = vrot.slane %v1489, 4
    %v1494 = vrot.slane %v1490, 4
    %vm1497 = vcmask 1043456
    %v1498 = vsel %vm1497, 0.0, %v1493
    %v1499 = vsel %vm1497, 0.0, %v1494
    %vm1502 = vcmask 1046528
    %v1503 = vrot.slane %v1498, 1
    %v1504 = vrot.slane %v1493, 1
    %v1505 = vsel %vm1502, %v1503, %v1504
    %v1506 = vrot.slane %v1499, 1
    %v1507 = vrot.slane %v1494, 1
    %v1508 = vsel %vm1502, %v1506, %v1507
    %1509 = vrot.lane.b32.xlu0 %v1505, 32
    %v1510 = vpop.permute.xlu0 %1509
    %1511 = vrot.lane.b32.xlu0 %v1508, 32
    %v1512 = vpop.permute.xlu0 %1511
    %vm1515 = vcmask 1045504
    %v1516 = vrot.slane %v1498, 2
    %v1517 = vrot.slane %v1493, 2
    %v1518 = vsel %vm1515, %v1516, %v1517
    %v1519 = vrot.slane %v1499, 2
    %v1520 = vrot.slane %v1494, 2
    %v1521 = vsel %vm1515, %v1519, %v1520
    %1522 = vrot.lane.b32.xlu0 %v1518, 64
    %v1523 = vpop.permute.xlu0 %1522
    %1524 = vrot.lane.b32.xlu0 %v1521, 64
    %v1525 = vpop.permute.xlu0 %1524
    %vm1528 = vcmask 1044480
    %v1529 = vrot.slane %v1498, 3
    %v1530 = vrot.slane %v1493, 3
    %v1531 = vsel %vm1528, %v1529, %v1530
    %v1532 = vrot.slane %v1499, 3
    %v1533 = vrot.slane %v1494, 3
    %v1534 = vsel %vm1528, %v1532, %v1533
    %1535 = vrot.lane.b32.xlu0 %v1531, 96
    %v1536 = vpop.permute.xlu0 %1535
    %1537 = vrot.lane.b32.xlu0 %v1534, 96
    %v1538 = vpop.permute.xlu0 %1537
    %v1541 = vrot.slane %v1498, 4
    %v1542 = vrot.slane %v1493, 4
    %v1543 = vsel %vm1497, %v1541, %v1542
    %v1544 = vrot.slane %v1499, 4
    %v1545 = vrot.slane %v1494, 4
    %v1546 = vsel %vm1497, %v1544, %v1545
    %v1547 = vsel %vm166, %v1498, %v1510
    %v1548 = vsel %vm166, %v1499, %v1512
    %vm1549 = vcmask 523264
    %v1550 = vsel %vm1549, %v1547, %v1523
    %v1551 = vsel %vm1549, %v1548, %v1525
    %vm1552 = vcmask 785408
    %v1553 = vsel %vm1552, %v1550, %v1536
    %v1554 = vsel %vm1552, %v1551, %v1538
    %v1555 = vld [vmem:[%s8] sm:$0xff]
    %v1556 = vld [vmem:[%s8 + $0x8] sm:$0xff]
    %v1557 = vld [vmem:[%s8 + $0x10] sm:$0xff]
    %v1558 = vld [vmem:[%s8 + $0x18] sm:$0xff]
    %v1559 = vld [vmem:[%s8 + $0x20] sm:$0xff]
    %v1560 = vld [vmem:[%s8 + $0x28] sm:$0xff]
    %v1561 = vld [vmem:[%s8 + $0x30] sm:$0xff]
    %v1562 = vld [vmem:[%s8 + $0x38] sm:$0xff]
    %v1563 = vld [vmem:[%s8 + $0x40] sm:$0xff]
    %v1564 = vld [vmem:[%s8 + $0x48] sm:$0xff]
    %v1565 = vld [vmem:[%s8 + $0x50] sm:$0xff]
    %v1566 = vld [vmem:[%s8 + $0x58] sm:$0xff]
    %v1567 = vld [vmem:[%s8 + $0x60] sm:$0xff]
    %v1568 = vld [vmem:[%s8 + $0x68] sm:$0xff]
    %v1569 = vld [vmem:[%s8 + $0x70] sm:$0xff]
    %v1570 = vld [vmem:[%s8 + $0x78] sm:$0xff]
    %v1571 = vld [vmem:[%s8 + $0x80] sm:$0xff]
    %v1572 = vld [vmem:[%s8 + $0x88] sm:$0xff]
    %v1573 = vld [vmem:[%s8 + $0x90] sm:$0xff]
    %v1574 = vld [vmem:[%s8 + $0x98] sm:$0xff]
    %v1575 = vld [vmem:[%s9] sm:$0x1]
    %v1577 = vlaneseq
    %v1578 = vshrl.u32 %v1577, 7
    %v1579 = vsub.s32 0, %v1578
    %v1580 = vrot.slane %v1575, %v1579
    %v1582 = vsel %vm166, %v1543, 0
    %v1584 = vsel %vm166, %v1546, 0
    %1586 = vmatprep.subr.mxu0 0.0
    %1587 = vmatpush1.msra.mxu0 %v1570
    %1588 = vmatprep.subr.mxu0 0.0
    %1589 = vmatpush1.msra.mxu0 %v1569
    %1590 = vmatprep.subr.mxu0 0.0
    %1591 = vmatpush1.msra.mxu0 %v1568
    %1592 = vmatprep.subr.mxu0 0.0
    %1593 = vmatpush1.msra.mxu0 %v1567
    %1594 = vmatprep.subr.mxu0 0.0
    %1595 = vmatpush1.msra.mxu0 %v1566
    %1596 = vmatprep.subr.mxu0 0.0
    %1597 = vmatpush1.msra.mxu0 %v1565
    %1598 = vmatprep.subr.mxu0 0.0
    %1599 = vmatpush1.msra.mxu0 %v1564
    %1600 = vmatprep.subr.mxu0 0.0
    %1601 = vmatpush1.msra.mxu0 %v1563
    %1602 = vmatprep.subr.mxu0 0.0
    %1603 = vmatpush1.msra.mxu0 %v1562
    %1604 = vmatprep.subr.mxu0 0.0
    %1605 = vmatpush1.msra.mxu0 %v1561
    %1606 = vmatprep.subr.mxu0 0.0
    %1607 = vmatpush1.msra.mxu0 %v1560
    %1608 = vmatprep.subr.mxu0 0.0
    %1609 = vmatpush1.msra.mxu0 %v1559
    %1610 = vmatprep.subr.mxu0 0.0
    %1611 = vmatpush1.msra.mxu0 %v1558
    %1612 = vmatprep.subr.mxu0 0.0
    %1613 = vmatpush1.msra.mxu0 %v1557
    %1614 = vmatprep.subr.mxu0 0.0
    %1615 = vmatpush1.msra.mxu0 %v1556
    %1616 = vmatprep.subr.mxu0 0.0
    %1617 = vmatpush1.msra.mxu0 %v1555
    %1618 = vmatprep.subr.mxu0 0.0
    %1619 = vmatpush2.msra.mxu0 0.0
    %1620 = vmatprep.subr.mxu0 0.0
    %1621 = vmatpush2.msra.mxu0 0.0
    %1622 = vmatprep.subr.mxu0 0.0
    %1623 = vmatpush2.msra.mxu0 0.0
    %1624 = vmatprep.subr.mxu0 0.0
    %1625 = vmatpush2.msra.mxu0 0.0
    %1626 = vmatprep.subr.mxu0 0.0
    %1627 = vmatpush2.msra.mxu0 0.0
    %1628 = vmatprep.subr.mxu0 0.0
    %1629 = vmatpush2.msra.mxu0 0.0
    %1630 = vmatprep.subr.mxu0 0.0
    %1631 = vmatpush2.msra.mxu0 0.0
    %1632 = vmatprep.subr.mxu0 0.0
    %1633 = vmatpush2.msra.mxu0 0.0
    %1634 = vmatprep.subr.mxu0 0.0
    %1635 = vmatpush2.msra.mxu0 0.0
    %1636 = vmatprep.subr.mxu0 0.0
    %1637 = vmatpush2.msra.mxu0 0.0
    %1638 = vmatprep.subr.mxu0 0.0
    %1639 = vmatpush2.msra.mxu0 0.0
    %1640 = vmatprep.subr.mxu0 0.0
    %1641 = vmatpush2.msra.mxu0 0.0
    %1642 = vmatprep.subr.mxu0 0.0
    %1643 = vmatpush2.msra.mxu0 %v1574
    %1644 = vmatprep.subr.mxu0 0.0
    %1645 = vmatpush2.msra.mxu0 %v1573
    %1646 = vmatprep.subr.mxu0 0.0
    %1647 = vmatpush2.msra.mxu0 %v1572
    %1648 = vmatprep.subr.mxu0 0.0
    %1649 = vmatpush2.msra.mxu0 %v1571
    %1650 = vmatprep.mubr.f32.mxu0 %v1582
    %1651 = vmatmul.mubr.f32.gmra.mxu0 %v1553
    %v1652 = vpop.f32.mrf.mxu0
    %v1653 = vadd.f32 %v1580, %v1652
    %v1654 = vpop.f32.mrf.mxu0
    %1655 = vmatprep.mubr.f32.mxu0 %v1584
    %1656 = vmatmul.mubr.f32.gmra.mxu0 %v1554
    %v1657 = vpop.f32.mrf.mxu0
    %v1658 = vadd.f32 %v1580, %v1657
    %v1659 = vpop.f32.mrf.mxu0
    %1660 = vdwg.mxu0
    %vm1661 = vcmp.gt.f32.partialorder %v1653, 20.0
    %vm1662 = vcmp.gt.f32.partialorder %v1658, 20.0
    %v1663 = vmin.f32 %v1653, 20.0
    %v1664 = vmin.f32 %v1658, 20.0
    %v1665 = vmul.f32 %v1663, 1.442695
    %v1666 = vpow.pop %v1665
    %v1667 = vmul.f32 %v1664, 1.442695
    %v1668 = vpow.pop %v1667
    %v1669 = vadd.f32 %v1666, 1.0
    %v1670 = vlog2.pop %v1669
    %v1671 = vmul.f32 %v1670, 0.6931472
    %v1672 = vmul.f32 -0.5, %v1666
    %v1673 = vadd.f32 %v1672, 1.0
    %v1674 = vmul.f32 %v1673, %v1666
    %v1675 = vand.u32 2147483647, %v1666
    %vm1676 = vcmp.lt.f32.partialorder %v1675, 0.0004427343
    %v1677 = vsel %vm1676, %v1674, %v1671
    %v1678 = vadd.f32 %v1668, 1.0
    %v1679 = vlog2.pop %v1678
    %v1680 = vmul.f32 %v1679, 0.6931472
    %v1681 = vmul.f32 -0.5, %v1668
    %v1682 = vadd.f32 %v1681, 1.0
    %v1683 = vmul.f32 %v1682, %v1668
    %v1684 = vand.u32 2147483647, %v1668
    %vm1685 = vcmp.lt.f32.partialorder %v1684, 0.0004427343
    %v1686 = vsel %vm1685, %v1683, %v1680
    %v1687 = vsel %vm1661, %v1653, %v1677
    %v1688 = vsel %vm1662, %v1658, %v1686
    %v1689 = vld [vmem:[%s10] sm:$0xff]
    %v1690 = vld [vmem:[%s10 + $0x8] sm:$0xff]
    %v1691 = vld [vmem:[%s10 + $0x10] sm:$0xff]
    %v1692 = vld [vmem:[%s10 + $0x18] sm:$0xff]
    %v1693 = vld [vmem:[%s10 + $0x20] sm:$0xff]
    %v1694 = vld [vmem:[%s10 + $0x28] sm:$0xff]
    %v1695 = vld [vmem:[%s10 + $0x30] sm:$0xff]
    %v1696 = vld [vmem:[%s10 + $0x38] sm:$0xff]
    %v1697 = vld [vmem:[%s11] sm:$0x1]
    %v1699 = vlaneseq
    %v1700 = vshrl.u32 %v1699, 7
    %v1701 = vsub.s32 0, %v1700
    %v1702 = vrot.slane %v1697, %v1701
    %v1705 = vsel %vm1549, %v1687, 0
    %v1708 = vsel %vm1549, %v1688, 0
    %1710 = vmatprep.subr.mxu0 0.0
    %1711 = vmatpush1.msra.mxu0 0.0
    %1712 = vmatprep.subr.mxu0 0.0
    %1713 = vmatpush1.msra.mxu0 0.0
    %1714 = vmatprep.subr.mxu0 0.0
    %1715 = vmatpush1.msra.mxu0 0.0
    %1716 = vmatprep.subr.mxu0 0.0
    %1717 = vmatpush1.msra.mxu0 0.0
    %1718 = vmatprep.subr.mxu0 0.0
    %1719 = vmatpush1.msra.mxu0 0.0
    %1720 = vmatprep.subr.mxu0 0.0
    %1721 = vmatpush1.msra.mxu0 0.0
    %1722 = vmatprep.subr.mxu0 0.0
    %1723 = vmatpush1.msra.mxu0 0.0
    %1724 = vmatprep.subr.mxu0 0.0
    %1725 = vmatpush1.msra.mxu0 0.0
    %1726 = vmatprep.subr.mxu0 0.0
    %1727 = vmatpush1.msra.mxu0 %v1696
    %1728 = vmatprep.subr.mxu0 0.0
    %1729 = vmatpush1.msra.mxu0 %v1695
    %1730 = vmatprep.subr.mxu0 0.0
    %1731 = vmatpush1.msra.mxu0 %v1694
    %1732 = vmatprep.subr.mxu0 0.0
    %1733 = vmatpush1.msra.mxu0 %v1693
    %1734 = vmatprep.subr.mxu0 0.0
    %1735 = vmatpush1.msra.mxu0 %v1692
    %1736 = vmatprep.subr.mxu0 0.0
    %1737 = vmatpush1.msra.mxu0 %v1691
    %1738 = vmatprep.subr.mxu0 0.0
    %1739 = vmatpush1.msra.mxu0 %v1690
    %1740 = vmatprep.subr.mxu0 0.0
    %1741 = vmatpush1.msra.mxu0 %v1689
    %1742 = vmatprep.subr.mxu0 0.0
    %1743 = vmatpush2.msra.mxu0 0.0
    %1744 = vmatprep.subr.mxu0 0.0
    %1745 = vmatpush2.msra.mxu0 0.0
    %1746 = vmatprep.subr.mxu0 0.0
    %1747 = vmatpush2.msra.mxu0 0.0
    %1748 = vmatprep.subr.mxu0 0.0
    %1749 = vmatpush2.msra.mxu0 0.0
    %1750 = vmatprep.subr.mxu0 0.0
    %1751 = vmatpush2.msra.mxu0 0.0
    %1752 = vmatprep.subr.mxu0 0.0
    %1753 = vmatpush2.msra.mxu0 0.0
    %1754 = vmatprep.subr.mxu0 0.0
    %1755 = vmatpush2.msra.mxu0 0.0
    %1756 = vmatprep.subr.mxu0 0.0
    %1757 = vmatpush2.msra.mxu0 0.0
    %1758 = vmatprep.subr.mxu0 0.0
    %1759 = vmatpush2.msra.mxu0 0.0
    %1760 = vmatprep.subr.mxu0 0.0
    %1761 = vmatpush2.msra.mxu0 0.0
    %1762 = vmatprep.subr.mxu0 0.0
    %1763 = vmatpush2.msra.mxu0 0.0
    %1764 = vmatprep.subr.mxu0 0.0
    %1765 = vmatpush2.msra.mxu0 0.0
    %1766 = vmatprep.subr.mxu0 0.0
    %1767 = vmatpush2.msra.mxu0 0.0
    %1768 = vmatprep.subr.mxu0 0.0
    %1769 = vmatpush2.msra.mxu0 0.0
    %1770 = vmatprep.subr.mxu0 0.0
    %1771 = vmatpush2.msra.mxu0 0.0
    %1772 = vmatprep.subr.mxu0 0.0
    %1773 = vmatpush2.msra.mxu0 0.0
    %1774 = vmatprep.mubr.f32.mxu0 0.0
    %1775 = vmatmul.mubr.f32.gmra.mxu0 %v1705
    %v1776 = vpop.f32.mrf.mxu0
    %v1777 = vadd.f32 %v1702, %v1776
    %v1778 = vpop.f32.mrf.mxu0
    %1779 = vmatprep.mubr.f32.mxu0 0.0
    %1780 = vmatmul.mubr.f32.gmra.mxu0 %v1708
    %v1781 = vpop.f32.mrf.mxu0
    %v1782 = vadd.f32 %v1702, %v1781
    %v1783 = vpop.f32.mrf.mxu0
    %1784 = vdwg.mxu0
    %vm1785 = vcmp.gt.f32.partialorder %v1777, 20.0
    %vm1786 = vcmp.gt.f32.partialorder %v1782, 20.0
    %v1787 = vmin.f32 %v1777, 20.0
    %v1788 = vmin.f32 %v1782, 20.0
    %v1789 = vmul.f32 %v1787, 1.442695
    %v1790 = vpow.pop %v1789
    %v1791 = vmul.f32 %v1788, 1.442695
    %v1792 = vpow.pop %v1791
    %v1793 = vadd.f32 %v1790, 1.0
    %v1794 = vlog2.pop %v1793
    %v1795 = vmul.f32 %v1794, 0.6931472
    %v1796 = vmul.f32 -0.5, %v1790
    %v1797 = vadd.f32 %v1796, 1.0
    %v1798 = vmul.f32 %v1797, %v1790
    %v1799 = vand.u32 2147483647, %v1790
    %vm1800 = vcmp.lt.f32.partialorder %v1799, 0.0004427343
    %v1801 = vsel %vm1800, %v1798, %v1795
    %v1802 = vadd.f32 %v1792, 1.0
    %v1803 = vlog2.pop %v1802
    %v1804 = vmul.f32 %v1803, 0.6931472
    %v1805 = vmul.f32 -0.5, %v1792
    %v1806 = vadd.f32 %v1805, 1.0
    %v1807 = vmul.f32 %v1806, %v1792
    %v1808 = vand.u32 2147483647, %v1792
    %vm1809 = vcmp.lt.f32.partialorder %v1808, 0.0004427343
    %v1810 = vsel %vm1809, %v1807, %v1804
    %v1811 = vsel %vm1785, %v1777, %v1801
    %v1812 = vsel %vm1786, %v1782, %v1810
    %v1813 = vadd.f32 %v1369, %v1811
    %v1814 = vadd.f32 %v1370, %v1812
    %v1815 = vld [vmem:[%s12] sm:$0xff]
    %v1816 = vld [vmem:[%s12 + $0x8] sm:$0xff]
    %v1817 = vld [vmem:[%s12 + $0x10] sm:$0xff]
    %v1818 = vld [vmem:[%s12 + $0x18] sm:$0xff]
    %v1819 = vld [vmem:[%s13] sm:$0x1]
    %v1821 = vlaneseq
    %v1822 = vshrl.u32 %v1821, 7
    %v1823 = vsub.s32 0, %v1822
    %v1824 = vrot.slane %v1819, %v1823
    %v1827 = vsel %vm166, %v1813, 0
    %v1830 = vsel %vm166, %v1814, 0
    %1832 = vmatprep.subr.mxu0 0.0
    %1833 = vmatpush1.msra.mxu0 0.0
    %1834 = vmatprep.subr.mxu0 0.0
    %1835 = vmatpush1.msra.mxu0 0.0
    %1836 = vmatprep.subr.mxu0 0.0
    %1837 = vmatpush1.msra.mxu0 0.0
    %1838 = vmatprep.subr.mxu0 0.0
    %1839 = vmatpush1.msra.mxu0 0.0
    %1840 = vmatprep.subr.mxu0 0.0
    %1841 = vmatpush1.msra.mxu0 0.0
    %1842 = vmatprep.subr.mxu0 0.0
    %1843 = vmatpush1.msra.mxu0 0.0
    %1844 = vmatprep.subr.mxu0 0.0
    %1845 = vmatpush1.msra.mxu0 0.0
    %1846 = vmatprep.subr.mxu0 0.0
    %1847 = vmatpush1.msra.mxu0 0.0
    %1848 = vmatprep.subr.mxu0 0.0
    %1849 = vmatpush1.msra.mxu0 0.0
    %1850 = vmatprep.subr.mxu0 0.0
    %1851 = vmatpush1.msra.mxu0 0.0
    %1852 = vmatprep.subr.mxu0 0.0
    %1853 = vmatpush1.msra.mxu0 0.0
    %1854 = vmatprep.subr.mxu0 0.0
    %1855 = vmatpush1.msra.mxu0 0.0
    %1856 = vmatprep.subr.mxu0 0.0
    %1857 = vmatpush1.msra.mxu0 %v1818
    %1858 = vmatprep.subr.mxu0 0.0
    %1859 = vmatpush1.msra.mxu0 %v1817
    %1860 = vmatprep.subr.mxu0 0.0
    %1861 = vmatpush1.msra.mxu0 %v1816
    %1862 = vmatprep.subr.mxu0 0.0
    %1863 = vmatpush1.msra.mxu0 %v1815
    %1864 = vmatprep.subr.mxu0 0.0
    %1865 = vmatpush2.msra.mxu0 0.0
    %1866 = vmatprep.subr.mxu0 0.0
    %1867 = vmatpush2.msra.mxu0 0.0
    %1868 = vmatprep.subr.mxu0 0.0
    %1869 = vmatpush2.msra.mxu0 0.0
    %1870 = vmatprep.subr.mxu0 0.0
    %1871 = vmatpush2.msra.mxu0 0.0
    %1872 = vmatprep.subr.mxu0 0.0
    %1873 = vmatpush2.msra.mxu0 0.0
    %1874 = vmatprep.subr.mxu0 0.0
    %1875 = vmatpush2.msra.mxu0 0.0
    %1876 = vmatprep.subr.mxu0 0.0
    %1877 = vmatpush2.msra.mxu0 0.0
    %1878 = vmatprep.subr.mxu0 0.0
    %1879 = vmatpush2.msra.mxu0 0.0
    %1880 = vmatprep.subr.mxu0 0.0
    %1881 = vmatpush2.msra.mxu0 0.0
    %1882 = vmatprep.subr.mxu0 0.0
    %1883 = vmatpush2.msra.mxu0 0.0
    %1884 = vmatprep.subr.mxu0 0.0
    %1885 = vmatpush2.msra.mxu0 0.0
    %1886 = vmatprep.subr.mxu0 0.0
    %1887 = vmatpush2.msra.mxu0 0.0
    %1888 = vmatprep.subr.mxu0 0.0
    %1889 = vmatpush2.msra.mxu0 0.0
    %1890 = vmatprep.subr.mxu0 0.0
    %1891 = vmatpush2.msra.mxu0 0.0
    %1892 = vmatprep.subr.mxu0 0.0
    %1893 = vmatpush2.msra.mxu0 0.0
    %1894 = vmatprep.subr.mxu0 0.0
    %1895 = vmatpush2.msra.mxu0 0.0
    %1896 = vmatprep.mubr.f32.mxu0 0.0
    %1897 = vmatmul.mubr.f32.gmra.mxu0 %v1827
    %v1898 = vpop.f32.mrf.mxu0
    %v1899 = vadd.f32 %v1824, %v1898
    %v1900 = vpop.f32.mrf.mxu0
    %1901 = vmatprep.mubr.f32.mxu0 0.0
    %1902 = vmatmul.mubr.f32.gmra.mxu0 %v1830
    %v1903 = vpop.f32.mrf.mxu0
    %v1904 = vadd.f32 %v1824, %v1903
    %v1905 = vpop.f32.mrf.mxu0
    %1906 = vdwg.mxu0
    %v1907 = vld [vmem:[%s14] sm:$0xff]
    %v1908 = vld [vmem:[%s15] sm:$0x1]
    %v1910 = vlaneseq
    %v1911 = vshrl.u32 %v1910, 7
    %v1912 = vsub.s32 0, %v1911
    %v1913 = vrot.slane %v1908, %v1912
    %vm1915 = vcmask 64512
    %v1917 = vsel %vm1915, %v1899, 0
    %v1920 = vsel %vm1915, %v1904, 0
    %1922 = vmatprep.subr.mxu0 0.0
    %1923 = vmatpush1.msra.mxu0 0.0
    %1924 = vmatprep.subr.mxu0 0.0
    %1925 = vmatpush1.msra.mxu0 0.0
    %1926 = vmatprep.subr.mxu0 0.0
    %1927 = vmatpush1.msra.mxu0 0.0
    %1928 = vmatprep.subr.mxu0 0.0
    %1929 = vmatpush1.msra.mxu0 0.0
    %1930 = vmatprep.subr.mxu0 0.0
    %1931 = vmatpush1.msra.mxu0 0.0
    %1932 = vmatprep.subr.mxu0 0.0
    %1933 = vmatpush1.msra.mxu0 0.0
    %1934 = vmatprep.subr.mxu0 0.0
    %1935 = vmatpush1.msra.mxu0 0.0
    %1936 = vmatprep.subr.mxu0 0.0
    %1937 = vmatpush1.msra.mxu0 0.0
    %1938 = vmatprep.subr.mxu0 0.0
    %1939 = vmatpush1.msra.mxu0 0.0
    %1940 = vmatprep.subr.mxu0 0.0
    %1941 = vmatpush1.msra.mxu0 0.0
    %1942 = vmatprep.subr.mxu0 0.0
    %1943 = vmatpush1.msra.mxu0 0.0
    %1944 = vmatprep.subr.mxu0 0.0
    %1945 = vmatpush1.msra.mxu0 0.0
    %1946 = vmatprep.subr.mxu0 0.0
    %1947 = vmatpush1.msra.mxu0 0.0
    %1948 = vmatprep.subr.mxu0 0.0
    %1949 = vmatpush1.msra.mxu0 0.0
    %1950 = vmatprep.subr.mxu0 0.0
    %1951 = vmatpush1.msra.mxu0 0.0
    %1952 = vmatprep.subr.mxu0 0.0
    %1953 = vmatpush1.msra.mxu0 %v1907
    %1954 = vmatprep.subr.mxu0 0.0
    %1955 = vmatpush2.msra.mxu0 0.0
    %1956 = vmatprep.subr.mxu0 0.0
    %1957 = vmatpush2.msra.mxu0 0.0
    %1958 = vmatprep.subr.mxu0 0.0
    %1959 = vmatpush2.msra.mxu0 0.0
    %1960 = vmatprep.subr.mxu0 0.0
    %1961 = vmatpush2.msra.mxu0 0.0
    %1962 = vmatprep.subr.mxu0 0.0
    %1963 = vmatpush2.msra.mxu0 0.0
    %1964 = vmatprep.subr.mxu0 0.0
    %1965 = vmatpush2.msra.mxu0 0.0
    %1966 = vmatprep.subr.mxu0 0.0
    %1967 = vmatpush2.msra.mxu0 0.0
    %1968 = vmatprep.subr.mxu0 0.0
    %1969 = vmatpush2.msra.mxu0 0.0
    %1970 = vmatprep.subr.mxu0 0.0
    %1971 = vmatpush2.msra.mxu0 0.0
    %1972 = vmatprep.subr.mxu0 0.0
    %1973 = vmatpush2.msra.mxu0 0.0
    %1974 = vmatprep.subr.mxu0 0.0
    %1975 = vmatpush2.msra.mxu0 0.0
    %1976 = vmatprep.subr.mxu0 0.0
    %1977 = vmatpush2.msra.mxu0 0.0
    %1978 = vmatprep.subr.mxu0 0.0
    %1979 = vmatpush2.msra.mxu0 0.0
    %1980 = vmatprep.subr.mxu0 0.0
    %1981 = vmatpush2.msra.mxu0 0.0
    %1982 = vmatprep.subr.mxu0 0.0
    %1983 = vmatpush2.msra.mxu0 0.0
    %1984 = vmatprep.subr.mxu0 0.0
    %1985 = vmatpush2.msra.mxu0 0.0
    %1986 = vmatprep.mubr.f32.mxu0 0.0
    %1987 = vmatmul.mubr.f32.gmra.mxu0 %v1917
    %v1988 = vpop.f32.mrf.mxu0
    %v1989 = vadd.f32 %v1913, %v1988
    %v1990 = vpop.f32.mrf.mxu0
    %1991 = vmatprep.mubr.f32.mxu0 0.0
    %1992 = vmatmul.mubr.f32.gmra.mxu0 %v1920
    %v1993 = vpop.f32.mrf.mxu0
    %v1994 = vadd.f32 %v1913, %v1993
    %v1995 = vpop.f32.mrf.mxu0
    %1996 = vdwg.mxu0
    %v1997 = vtanh.pop %v1989
    %v1998 = vtanh.pop %v1994
    %v1999 = vld [vmem:[%s16] sm:$0xff]
    %v2000 = vld [vmem:[%s16 + $0x8] sm:$0xff]
    %v2001 = vld [vmem:[%s17] sm:$0x1]
    %v2003 = vlaneseq
    %v2004 = vshrl.u32 %v2003, 7
    %v2005 = vsub.s32 0, %v2004
    %v2006 = vrot.slane %v2001, %v2005
    %v2009 = vsel %vm70, %v1997, 0
    %v2012 = vsel %vm70, %v1998, 0
    %2014 = vmatprep.subr.mxu0 0.0
    %2015 = vmatpush1.msra.mxu0 0.0
    %2016 = vmatprep.subr.mxu0 0.0
    %2017 = vmatpush1.msra.mxu0 0.0
    %2018 = vmatprep.subr.mxu0 0.0
    %2019 = vmatpush1.msra.mxu0 0.0
    %2020 = vmatprep.subr.mxu0 0.0
    %2021 = vmatpush1.msra.mxu0 0.0
    %2022 = vmatprep.subr.mxu0 0.0
    %2023 = vmatpush1.msra.mxu0 0.0
    %2024 = vmatprep.subr.mxu0 0.0
    %2025 = vmatpush1.msra.mxu0 0.0
    %2026 = vmatprep.subr.mxu0 0.0
    %2027 = vmatpush1.msra.mxu0 0.0
    %2028 = vmatprep.subr.mxu0 0.0
    %2029 = vmatpush1.msra.mxu0 0.0
    %2030 = vmatprep.subr.mxu0 0.0
    %2031 = vmatpush1.msra.mxu0 0.0
    %2032 = vmatprep.subr.mxu0 0.0
    %2033 = vmatpush1.msra.mxu0 0.0
    %2034 = vmatprep.subr.mxu0 0.0
    %2035 = vmatpush1.msra.mxu0 0.0
    %2036 = vmatprep.subr.mxu0 0.0
    %2037 = vmatpush1.msra.mxu0 0.0
    %2038 = vmatprep.subr.mxu0 0.0
    %2039 = vmatpush1.msra.mxu0 0.0
    %2040 = vmatprep.subr.mxu0 0.0
    %2041 = vmatpush1.msra.mxu0 0.0
    %2042 = vmatprep.subr.mxu0 0.0
    %2043 = vmatpush1.msra.mxu0 %v2000
    %2044 = vmatprep.subr.mxu0 0.0
    %2045 = vmatpush1.msra.mxu0 %v1999
    %2046 = vmatprep.subr.mxu0 0.0
    %2047 = vmatpush2.msra.mxu0 0.0
    %2048 = vmatprep.subr.mxu0 0.0
    %2049 = vmatpush2.msra.mxu0 0.0
    %2050 = vmatprep.subr.mxu0 0.0
    %2051 = vmatpush2.msra.mxu0 0.0
    %2052 = vmatprep.subr.mxu0 0.0
    %2053 = vmatpush2.msra.mxu0 0.0
    %2054 = vmatprep.subr.mxu0 0.0
    %2055 = vmatpush2.msra.mxu0 0.0
    %2056 = vmatprep.subr.mxu0 0.0
    %2057 = vmatpush2.msra.mxu0 0.0
    %2058 = vmatprep.subr.mxu0 0.0
    %2059 = vmatpush2.msra.mxu0 0.0
    %2060 = vmatprep.subr.mxu0 0.0
    %2061 = vmatpush2.msra.mxu0 0.0
    %2062 = vmatprep.subr.mxu0 0.0
    %2063 = vmatpush2.msra.mxu0 0.0
    %2064 = vmatprep.subr.mxu0 0.0
    %2065 = vmatpush2.msra.mxu0 0.0
    %2066 = vmatprep.subr.mxu0 0.0
    %2067 = vmatpush2.msra.mxu0 0.0
    %2068 = vmatprep.subr.mxu0 0.0
    %2069 = vmatpush2.msra.mxu0 0.0
    %2070 = vmatprep.subr.mxu0 0.0
    %2071 = vmatpush2.msra.mxu0 0.0
    %2072 = vmatprep.subr.mxu0 0.0
    %2073 = vmatpush2.msra.mxu0 0.0
    %2074 = vmatprep.subr.mxu0 0.0
    %2075 = vmatpush2.msra.mxu0 0.0
    %2076 = vmatprep.subr.mxu0 0.0
    %2077 = vmatpush2.msra.mxu0 0.0
    %2078 = vmatprep.mubr.f32.mxu0 0.0
    %2079 = vmatmul.mubr.f32.gmra.mxu0 %v2009
    %v2080 = vpop.f32.mrf.mxu0
    %v2081 = vadd.f32 %v2006, %v2080
    %v2082 = vpop.f32.mrf.mxu0
    %2083 = vmatprep.mubr.f32.mxu0 0.0
    %2084 = vmatmul.mubr.f32.gmra.mxu0 %v2012
    %v2085 = vpop.f32.mrf.mxu0
    %v2086 = vadd.f32 %v2006, %v2085
    %v2087 = vpop.f32.mrf.mxu0
    %2088 = vdwg.mxu0
    %2089 = vst.msk [vmem:[#allocation5] sm:$0xff] %vm1915, %v1899
    %2090 = vst.msk [vmem:[#allocation5 + $0x8] sm:$0xff] %vm1915, %v1904
    %2091 = vst.msk [vmem:[#allocation7] sm:$0xff] %vm70, %v1989
    %2092 = vst.msk [vmem:[#allocation7 + $0x8] sm:$0xff] %vm70, %v1994
    %vm2093 = vcmask 171008
    %2094 = vst.msk [vmem:[#allocation3] sm:$0xff] %vm2093, %v2081
    %2095 = vst.msk [vmem:[#allocation3 + $0x8] sm:$0xff] %vm2093, %v2086
    // Predicated region
    $region74: #{_lambda_.1} parent=1 // pred_check
      _
    $region75: #{_lambda_.1} parent=1 // pred_check_branch
      %2097 = sbr.rel (0) target = $region77
    $region76: #{_lambda_.1} parent=1 // pred_region
      %s2099 = ssub.s32 256, 256
      %2100 = vsyncadd [#allocation4], %s2099
      %s2101 = sshll.u32 [#allocation3], 4
      %s2102 = int_to_ptr.vmem [resolvable:$true] %s2101
      %2107 = dma.vmem_to_hbm [thread:$0]  %s2102, 256, %s18, [#allocation4], 128, 128, 8
    $region77: #{_lambda_.1} parent=1 // pred_fallthru
      _
    // Predicated region
    $region78: #{_lambda_.1} parent=1 // pred_check
      _
    $region79: #{_lambda_.1} parent=1 // pred_check_branch
      %2109 = sbr.rel (0) target = $region81
    $region80: #{_lambda_.1} parent=1 // pred_region
      %s2111 = ssub.s32 256, 256
      %2112 = vsyncadd [#allocation6], %s2111
      %s2113 = sshll.u32 [#allocation5], 4
      %s2114 = int_to_ptr.vmem [resolvable:$true] %s2113
      %2119 = dma.vmem_to_hbm [thread:$0]  %s2114, 256, %s19, [#allocation6], 128, 128, 8
    $region81: #{_lambda_.1} parent=1 // pred_fallthru
      _
    // Predicated region
    $region82: #{_lambda_.1} parent=1 // pred_check
      _
    $region83: #{_lambda_.1} parent=1 // pred_check_branch
      %2121 = sbr.rel (0) target = $region85
    $region84: #{_lambda_.1} parent=1 // pred_region
      %s2123 = ssub.s32 256, 256
      %2124 = vsyncadd [#allocation6], %s2123
      %s2125 = sshll.u32 [#allocation7], 4
      %s2126 = int_to_ptr.vmem [resolvable:$true] %s2125
      %2131 = dma.vmem_to_hbm [thread:$0]  %s2126, 256, %s20, [#allocation6], 128, 128, 8
    $region85: #{_lambda_.1} parent=1 // pred_fallthru
      _
    // Predicated region
    $region86: #{_lambda_.1} parent=1 // pred_check
      _
    $region87: #{_lambda_.1} parent=1 // pred_check_branch
      %2133 = sbr.rel (0) target = $region89
    $region88: #{_lambda_.1} parent=1 // pred_region
      %2134 = dma.done [#allocation4], 256
    $region89: #{_lambda_.1} parent=1 // pred_fallthru
      _
    // Predicated region
    $region90: #{_lambda_.1} parent=1 // pred_check
      _
    $region91: #{_lambda_.1} parent=1 // pred_check_branch
      %2136 = sbr.rel (0) target = $region93
    $region92: #{_lambda_.1} parent=1 // pred_region
      %2137 = dma.done [#allocation6], 256
    $region93: #{_lambda_.1} parent=1 // pred_fallthru
      _
    // Predicated region
    $region94: #{_lambda_.1} parent=1 // pred_check
      _
    $region95: #{_lambda_.1} parent=1 // pred_check_branch
      %2139 = sbr.rel (0) target = $region97
    $region96: #{_lambda_.1} parent=1 // pred_region
      %2140 = dma.done [#allocation6], 256
    $region97: #{_lambda_.1} parent=1 // pred_fallthru
      _
    %2141 = vsyncpa [#allocation4], 1
    %2142 = vsyncpa [#allocation6], 1

</llo_original>
